<compile_context>
chip_gen: v7x
topology: tpu7x:2x2x1
jax: 0.10.0
libtpu: 0.0.40
codegen_flags: <defaults>
</compile_context>

<pallas_src>
import numpy as np
import jax
import jax.numpy as jnp
from jax.experimental import pallas as pl
from jax.experimental.pallas import tpu as pltpu

H = 50  # hidden width of the MLP

# ----------------------------------------------------------------------------
# Barycentric rational activation ("baryrat" model): Chebyshev nodes on [-3,3],
# node values tanh(z_j), standard alternating barycentric weights.  Constants
# are baked into the kernel at trace time (pure VPU/EUP elementwise work).
# ----------------------------------------------------------------------------
_N_NODES = 8
_j = np.arange(_N_NODES)
_Z = (3.0 * np.cos((2 * _j + 1) * np.pi / (2 * _N_NODES))).astype(np.float32)
_F = np.tanh(_Z).astype(np.float32)
_W = ((-1.0) ** _j * np.sin((2 * _j + 1) * np.pi / (2 * _N_NODES))).astype(np.float32)
_WF = (_W * _F).astype(np.float32)  # pre-fused w_j * f_j (saves one vmul/node/elem)


def _baryrat(x):
    """Barycentric rational eval; all divides go to the EUP (approx recip)."""
    num = jnp.zeros_like(x)
    den = jnp.zeros_like(x)
    for zj, wj, wfj in zip(_Z, _W, _WF):
        d = x - jnp.float32(zj)
        # guard only the exact node hit (sign of d is irrelevant at d == 0,
        # so no sign-flip issue; near-node values are left untouched).
        d = jnp.where(d == 0.0, jnp.float32(1e-12), d)
        r = pl.reciprocal(d, approx=True)           # EUP slot, VALU stays free
        num = num + jnp.float32(wfj) * r
        den = den + jnp.float32(wj) * r
    return num * pl.reciprocal(den, approx=True)


def _layernorm_f(h, gamma, beta, eps=1e-5):
    """torch.nn.LayerNorm semantics over the feature axis (axis 0) of (H, TB)."""
    mu = jnp.mean(h, axis=0, keepdims=True)
    var = jnp.mean((h - mu) ** 2, axis=0, keepdims=True)
    xhat = (h - mu) * jax.lax.rsqrt(var + jnp.float32(eps))
    return xhat * gamma + beta


# ----------------------------------------------------------------------------
# Pallas kernel: one batch tile (TB columns) per grid step, feature-major.
#   x_ref   : (1, TB)   batch on lanes
#   vec_ref : (H, 9)    packed columns [w1, b1, g1, be1, b2, g2, be2, w3, b3]
#   w2_ref  : (H, H)    fc2 weight in torch (out, in) layout
#   o_ref   : (1, TB)   lane-dense output
# ----------------------------------------------------------------------------
def net_kernel(x_ref, vec_ref, w2_ref, o_ref):
    x = x_ref[...]                                   # (1, TB) f32

    w1  = vec_ref[:, 0:1]
    b1  = vec_ref[:, 1:2]
    g1  = vec_ref[:, 2:3]
    be1 = vec_ref[:, 3:4]
    b2  = vec_ref[:, 4:5]
    g2  = vec_ref[:, 5:6]
    be2 = vec_ref[:, 6:7]
    w3  = vec_ref[:, 7:8]
    b3  = vec_ref[0:1, 8:9]                          # (1, 1)

    # fc1 (in_features = 1): broadcast FMA on the VPU, no K=1 MXU round-trip
    h = w1 * x + b1                                  # (H, TB)
    h = _baryrat(h)                                  # R1
    h = _layernorm_f(h, g1, be1)                     # ln1

    # fc2: the only real matmul (K = 50) -> MXU
    h = jnp.dot(w2_ref[...], h, preferred_element_type=jnp.float32) + b2
    h = _baryrat(h)                                  # R2
    h = _layernorm_f(h, g2, be2)                     # ln2

    # fc3 (out_features = 1): VPU mul + sublane reduce instead of (TB,50)@(50,1)
    o = jnp.sum(h * w3, axis=0, keepdims=True) + b3  # (1, TB)
    o_ref[...] = o.astype(o_ref.dtype)


def _round_up(n, m):
    return ((n + m - 1) // m) * m


def net_forward(x, params, block_n=1024):
    """x: (N, 1) float32 -> (N, 1) float32 (matches Net.forward)."""
    N = x.shape[0]
    xb = x.reshape(1, N).astype(jnp.float32)         # lane-dense batch layout

    TB = min(block_n, _round_up(N, 128))             # lane-aligned batch tile
    Np = _round_up(N, TB)
    if Np != N:
        xb = jnp.pad(xb, ((0, 0), (0, Np - N)))      # padded cols are discarded

    # Pack all per-feature vectors into one (H, 9) slab -> single tiny DMA.
    vecs = jnp.stack(
        [params["w1"][:, 0], params["b1"], params["g1"], params["be1"],
         params["b2"], params["g2"], params["be2"], params["w3"][0, :],
         jnp.full((H,), params["b3"][0], jnp.float32)],
        axis=1).astype(jnp.float32)                  # (H, 9)
    w2 = params["w2"].astype(jnp.float32)            # (H, H)

    out = pl.pallas_call(
        net_kernel,
        out_shape=jax.ShapeDtypeStruct((1, Np), jnp.float32),
        grid=(Np // TB,),
        in_specs=[
            pl.BlockSpec((1, TB), lambda i: (0, i)),   # batch tile (pipelined)
            pl.BlockSpec((H, 9), lambda i: (0, 0)),    # packed vectors (resident)
            pl.BlockSpec((H, H), lambda i: (0, 0)),    # fc2 weight (resident)
        ],
        out_specs=pl.BlockSpec((1, TB), lambda i: (0, i)),
        compiler_params=pltpu.CompilerParams(
            dimension_semantics=("parallel",),         # shard batch across TCs
            vmem_limit_bytes=32 * 1024 * 1024,         # safe on v5e/v6e/v7x
        ),
    )(xb, vecs, w2)

    return out[0, :N].reshape(N, 1)


def init_params(key):
    """Deterministic init mirroring torch defaults (U(-1/sqrt(fan_in), ...))."""
    ks = jax.random.split(key, 6)

    def lin(kw, kb, fan_in, fan_out):
        bound = 1.0 / np.sqrt(fan_in)
        w = jax.random.uniform(kw, (fan_out, fan_in), jnp.float32, -bound, bound)
        b = jax.random.uniform(kb, (fan_out,), jnp.float32, -bound, bound)
        return w, b

    w1, b1 = lin(ks[0], ks[1], 1, H)      # (50, 1), (50,)
    w2, b2 = lin(ks[2], ks[3], H, H)      # (50, 50), (50,)
    w3, b3 = lin(ks[4], ks[5], H, 1)      # (1, 50), (1,)
    return dict(
        w1=w1, b1=b1,
        g1=jnp.ones((H,), jnp.float32), be1=jnp.zeros((H,), jnp.float32),
        w2=w2, b2=b2,
        g2=jnp.ones((H,), jnp.float32), be2=jnp.zeros((H,), jnp.float32),
        w3=w3, b3=b3,
    )


if __name__ == "__main__":
    key = jax.random.PRNGKey(0)
    kx, kp = jax.random.split(key)
    N = 8
    x = 2.0 * jax.random.normal(kx, (N, 1), jnp.float32)   # scalar inputs
    params = init_params(kp)

    out = jax.block_until_ready(net_forward(x, params))
    assert out.shape == (N, 1) and out.dtype == jnp.float32
    assert bool(jnp.all(jnp.isfinite(out)))
    print("KERNEL_OK")
</pallas_src>

<mosaic_0001>
module attributes {stable_mosaic.version = 11 : i64} {
  func.func @net_kernel(%arg0: i32, %arg1: memref<1x128xf32, #tpu.memory_space<vmem>>, %arg2: memref<50x9xf32, #tpu.memory_space<vmem>>, %arg3: memref<50x50xf32, #tpu.memory_space<vmem>>, %arg4: memref<1x128xf32, #tpu.memory_space<vmem>>) attributes {dimension_semantics = [#tpu.dimension_semantics<parallel>], iteration_bounds = array<i64: 1>, scalar_prefetch = 0 : i64, scratch_operands = 0 : i64, tpu.core_type = #tpu.core_type<tc>, window_params = [{transform_indices = @transform_0, window_bounds = array<i64: 1, 128>}, {pipeline_mode = #tpu.pipeline_mode<synchronous>, transform_indices = @transform_1, window_bounds = array<i64: 50, 9>}, {pipeline_mode = #tpu.pipeline_mode<synchronous>, transform_indices = @transform_2, window_bounds = array<i64: 50, 50>}, {transform_indices = @transform_3, window_bounds = array<i64: 1, 128>}]} {
    %c0 = arith.constant 0 : index
    %c0_0 = arith.constant 0 : index
    %0 = vector.load %arg1[%c0, %c0_0] : memref<1x128xf32, #tpu.memory_space<vmem>>, vector<1x128xf32>
    %c0_1 = arith.constant 0 : index
    %c0_2 = arith.constant 0 : index
    %1 = vector.load %arg2[%c0_1, %c0_2] : memref<50x9xf32, #tpu.memory_space<vmem>>, vector<50x1xf32>
    %c0_3 = arith.constant 0 : index
    %c1 = arith.constant 1 : index
    %2 = vector.load %arg2[%c0_3, %c1] : memref<50x9xf32, #tpu.memory_space<vmem>>, vector<50x1xf32>
    %c0_4 = arith.constant 0 : index
    %c2 = arith.constant 2 : index
    %3 = vector.load %arg2[%c0_4, %c2] : memref<50x9xf32, #tpu.memory_space<vmem>>, vector<50x1xf32>
    %c0_5 = arith.constant 0 : index
    %c3 = arith.constant 3 : index
    %4 = vector.load %arg2[%c0_5, %c3] : memref<50x9xf32, #tpu.memory_space<vmem>>, vector<50x1xf32>
    %c0_6 = arith.constant 0 : index
    %c4 = arith.constant 4 : index
    %5 = vector.load %arg2[%c0_6, %c4] : memref<50x9xf32, #tpu.memory_space<vmem>>, vector<50x1xf32>
    %c0_7 = arith.constant 0 : index
    %c5 = arith.constant 5 : index
    %6 = vector.load %arg2[%c0_7, %c5] : memref<50x9xf32, #tpu.memory_space<vmem>>, vector<50x1xf32>
    %c0_8 = arith.constant 0 : index
    %c6 = arith.constant 6 : index
    %7 = vector.load %arg2[%c0_8, %c6] : memref<50x9xf32, #tpu.memory_space<vmem>>, vector<50x1xf32>
    %c0_9 = arith.constant 0 : index
    %c7 = arith.constant 7 : index
    %8 = vector.load %arg2[%c0_9, %c7] : memref<50x9xf32, #tpu.memory_space<vmem>>, vector<50x1xf32>
    %c0_10 = arith.constant 0 : index
    %c8 = arith.constant 8 : index
    %9 = vector.load %arg2[%c0_10, %c8] : memref<50x9xf32, #tpu.memory_space<vmem>>, vector<1x1xf32>
    %10 = vector.broadcast %1 : vector<50x1xf32> to vector<50x128xf32>
    %11 = vector.broadcast %0 : vector<1x128xf32> to vector<50x128xf32>
    %12 = arith.mulf %10, %11 : vector<50x128xf32>
    %13 = vector.broadcast %2 : vector<50x1xf32> to vector<50x128xf32>
    %14 = arith.addf %12, %13 : vector<50x128xf32>
    %cst = arith.constant 0.000000e+00 : f32
    %15 = vector.broadcast %cst : f32 to vector<50x128xf32>
    %cst_11 = arith.constant 0.000000e+00 : f32
    %16 = vector.broadcast %cst_11 : f32 to vector<50x128xf32>
    %cst_12 = arith.constant 2.94235587 : f32
    %17 = vector.broadcast %cst_12 : f32 to vector<50x128xf32>
    %18 = arith.subf %14, %17 : vector<50x128xf32>
    %cst_13 = arith.constant 0.000000e+00 : f32
    %19 = vector.broadcast %cst_13 : f32 to vector<50x128xf32>
    %20 = arith.cmpf oeq, %18, %19 : vector<50x128xf32>
    %cst_14 = arith.constant 9.99999996E-13 : f32
    %21 = vector.broadcast %cst_14 : f32 to vector<50x128xf32>
    %22 = arith.select %20, %21, %18 : vector<50x128xi1>, vector<50x128xf32>
    %23 = tpu.reciprocal %22 {approx = true} : vector<50x128xf32> -> vector<50x128xf32>
    %cst_15 = arith.constant 1.940080e-01 : f32
    %24 = vector.broadcast %cst_15 : f32 to vector<50x128xf32>
    %25 = arith.mulf %24, %23 : vector<50x128xf32>
    %26 = arith.addf %15, %25 : vector<50x128xf32>
    %cst_16 = arith.constant 0.195090324 : f32
    %27 = vector.broadcast %cst_16 : f32 to vector<50x128xf32>
    %28 = arith.mulf %27, %23 : vector<50x128xf32>
    %29 = arith.addf %16, %28 : vector<50x128xf32>
    %cst_17 = arith.constant 2.49440885 : f32
    %30 = vector.broadcast %cst_17 : f32 to vector<50x128xf32>
    %31 = arith.subf %14, %30 : vector<50x128xf32>
    %cst_18 = arith.constant 0.000000e+00 : f32
    %32 = vector.broadcast %cst_18 : f32 to vector<50x128xf32>
    %33 = arith.cmpf oeq, %31, %32 : vector<50x128xf32>
    %cst_19 = arith.constant 9.99999996E-13 : f32
    %34 = vector.broadcast %cst_19 : f32 to vector<50x128xf32>
    %35 = arith.select %33, %34, %31 : vector<50x128xi1>, vector<50x128xf32>
    %36 = tpu.reciprocal %35 {approx = true} : vector<50x128xf32> -> vector<50x128xf32>
    %cst_20 = arith.constant -0.548050463 : f32
    %37 = vector.broadcast %cst_20 : f32 to vector<50x128xf32>
    %38 = arith.mulf %37, %36 : vector<50x128xf32>
    %39 = arith.addf %26, %38 : vector<50x128xf32>
    %cst_21 = arith.constant -0.555570245 : f32
    %40 = vector.broadcast %cst_21 : f32 to vector<50x128xf32>
    %41 = arith.mulf %40, %36 : vector<50x128xf32>
    %42 = arith.addf %29, %41 : vector<50x128xf32>
    %cst_22 = arith.constant 1.66671073 : f32
    %43 = vector.broadcast %cst_22 : f32 to vector<50x128xf32>
    %44 = arith.subf %14, %43 : vector<50x128xf32>
    %cst_23 = arith.constant 0.000000e+00 : f32
    %45 = vector.broadcast %cst_23 : f32 to vector<50x128xf32>
    %46 = arith.cmpf oeq, %44, %45 : vector<50x128xf32>
    %cst_24 = arith.constant 9.99999996E-13 : f32
    %47 = vector.broadcast %cst_24 : f32 to vector<50x128xf32>
    %48 = arith.select %46, %47, %44 : vector<50x128xi1>, vector<50x128xf32>
    %49 = tpu.reciprocal %48 {approx = true} : vector<50x128xf32> -> vector<50x128xf32>
    %cst_25 = arith.constant 0.77419418 : f32
    %50 = vector.broadcast %cst_25 : f32 to vector<50x128xf32>
    %51 = arith.mulf %50, %49 : vector<50x128xf32>
    %52 = arith.addf %39, %51 : vector<50x128xf32>
    %cst_26 = arith.constant 0.831469595 : f32
    %53 = vector.broadcast %cst_26 : f32 to vector<50x128xf32>
    %54 = arith.mulf %53, %49 : vector<50x128xf32>
    %55 = arith.addf %42, %54 : vector<50x128xf32>
    %cst_27 = arith.constant 0.585270941 : f32
    %56 = vector.broadcast %cst_27 : f32 to vector<50x128xf32>
    %57 = arith.subf %14, %56 : vector<50x128xf32>
    %cst_28 = arith.constant 0.000000e+00 : f32
    %58 = vector.broadcast %cst_28 : f32 to vector<50x128xf32>
    %59 = arith.cmpf oeq, %57, %58 : vector<50x128xf32>
    %cst_29 = arith.constant 9.99999996E-13 : f32
    %60 = vector.broadcast %cst_29 : f32 to vector<50x128xf32>
    %61 = arith.select %59, %60, %57 : vector<50x128xi1>, vector<50x128xf32>
    %62 = tpu.reciprocal %61 {approx = true} : vector<50x128xf32> -> vector<50x128xf32>
    %cst_30 = arith.constant -0.516369641 : f32
    %63 = vector.broadcast %cst_30 : f32 to vector<50x128xf32>
    %64 = arith.mulf %63, %62 : vector<50x128xf32>
    %65 = arith.addf %52, %64 : vector<50x128xf32>
    %cst_31 = arith.constant -0.98078525 : f32
    %66 = vector.broadcast %cst_31 : f32 to vector<50x128xf32>
    %67 = arith.mulf %66, %62 : vector<50x128xf32>
    %68 = arith.addf %55, %67 : vector<50x128xf32>
    %cst_32 = arith.constant -0.585270941 : f32
    %69 = vector.broadcast %cst_32 : f32 to vector<50x128xf32>
    %70 = arith.subf %14, %69 : vector<50x128xf32>
    %cst_33 = arith.constant 0.000000e+00 : f32
    %71 = vector.broadcast %cst_33 : f32 to vector<50x128xf32>
    %72 = arith.cmpf oeq, %70, %71 : vector<50x128xf32>
    %cst_34 = arith.constant 9.99999996E-13 : f32
    %73 = vector.broadcast %cst_34 : f32 to vector<50x128xf32>
    %74 = arith.select %72, %73, %70 : vector<50x128xi1>, vector<50x128xf32>
    %75 = tpu.reciprocal %74 {approx = true} : vector<50x128xf32> -> vector<50x128xf32>
    %cst_35 = arith.constant -0.516369641 : f32
    %76 = vector.broadcast %cst_35 : f32 to vector<50x128xf32>
    %77 = arith.mulf %76, %75 : vector<50x128xf32>
    %78 = arith.addf %65, %77 : vector<50x128xf32>
    %cst_36 = arith.constant 0.98078525 : f32
    %79 = vector.broadcast %cst_36 : f32 to vector<50x128xf32>
    %80 = arith.mulf %79, %75 : vector<50x128xf32>
    %81 = arith.addf %68, %80 : vector<50x128xf32>
    %cst_37 = arith.constant -1.66671073 : f32
    %82 = vector.broadcast %cst_37 : f32 to vector<50x128xf32>
    %83 = arith.subf %14, %82 : vector<50x128xf32>
    %cst_38 = arith.constant 0.000000e+00 : f32
    %84 = vector.broadcast %cst_38 : f32 to vector<50x128xf32>
    %85 = arith.cmpf oeq, %83, %84 : vector<50x128xf32>
    %cst_39 = arith.constant 9.99999996E-13 : f32
    %86 = vector.broadcast %cst_39 : f32 to vector<50x128xf32>
    %87 = arith.select %85, %86, %83 : vector<50x128xi1>, vector<50x128xf32>
    %88 = tpu.reciprocal %87 {approx = true} : vector<50x128xf32> -> vector<50x128xf32>
    %cst_40 = arith.constant 0.77419418 : f32
    %89 = vector.broadcast %cst_40 : f32 to vector<50x128xf32>
    %90 = arith.mulf %89, %88 : vector<50x128xf32>
    %91 = arith.addf %78, %90 : vector<50x128xf32>
    %cst_41 = arith.constant -0.831469595 : f32
    %92 = vector.broadcast %cst_41 : f32 to vector<50x128xf32>
    %93 = arith.mulf %92, %88 : vector<50x128xf32>
    %94 = arith.addf %81, %93 : vector<50x128xf32>
    %cst_42 = arith.constant -2.49440885 : f32
    %95 = vector.broadcast %cst_42 : f32 to vector<50x128xf32>
    %96 = arith.subf %14, %95 : vector<50x128xf32>
    %cst_43 = arith.constant 0.000000e+00 : f32
    %97 = vector.broadcast %cst_43 : f32 to vector<50x128xf32>
    %98 = arith.cmpf oeq, %96, %97 : vector<50x128xf32>
    %cst_44 = arith.constant 9.99999996E-13 : f32
    %99 = vector.broadcast %cst_44 : f32 to vector<50x128xf32>
    %100 = arith.select %98, %99, %96 : vector<50x128xi1>, vector<50x128xf32>
    %101 = tpu.reciprocal %100 {approx = true} : vector<50x128xf32> -> vector<50x128xf32>
    %cst_45 = arith.constant -0.548050463 : f32
    %102 = vector.broadcast %cst_45 : f32 to vector<50x128xf32>
    %103 = arith.mulf %102, %101 : vector<50x128xf32>
    %104 = arith.addf %91, %103 : vector<50x128xf32>
    %cst_46 = arith.constant 0.555570245 : f32
    %105 = vector.broadcast %cst_46 : f32 to vector<50x128xf32>
    %106 = arith.mulf %105, %101 : vector<50x128xf32>
    %107 = arith.addf %94, %106 : vector<50x128xf32>
    %cst_47 = arith.constant -2.94235587 : f32
    %108 = vector.broadcast %cst_47 : f32 to vector<50x128xf32>
    %109 = arith.subf %14, %108 : vector<50x128xf32>
    %cst_48 = arith.constant 0.000000e+00 : f32
    %110 = vector.broadcast %cst_48 : f32 to vector<50x128xf32>
    %111 = arith.cmpf oeq, %109, %110 : vector<50x128xf32>
    %cst_49 = arith.constant 9.99999996E-13 : f32
    %112 = vector.broadcast %cst_49 : f32 to vector<50x128xf32>
    %113 = arith.select %111, %112, %109 : vector<50x128xi1>, vector<50x128xf32>
    %114 = tpu.reciprocal %113 {approx = true} : vector<50x128xf32> -> vector<50x128xf32>
    %cst_50 = arith.constant 1.940080e-01 : f32
    %115 = vector.broadcast %cst_50 : f32 to vector<50x128xf32>
    %116 = arith.mulf %115, %114 : vector<50x128xf32>
    %117 = arith.addf %104, %116 : vector<50x128xf32>
    %cst_51 = arith.constant -0.195090324 : f32
    %118 = vector.broadcast %cst_51 : f32 to vector<50x128xf32>
    %119 = arith.mulf %118, %114 : vector<50x128xf32>
    %120 = arith.addf %107, %119 : vector<50x128xf32>
    %121 = tpu.reciprocal %120 {approx = true} : vector<50x128xf32> -> vector<50x128xf32>
    %122 = arith.mulf %117, %121 : vector<50x128xf32>
    %cst_52 = arith.constant dense<0.000000e+00> : vector<128xf32>
    %123 = vector.multi_reduction <add>, %122, %cst_52 [0] : vector<50x128xf32> to vector<128xf32>
    %124 = vector.shape_cast %123 : vector<128xf32> to vector<1x128xf32>
    %cst_53 = arith.constant 5.000000e+01 : f32
    %125 = vector.broadcast %cst_53 : f32 to vector<1x128xf32>
    %126 = arith.divf %124, %125 : vector<1x128xf32>
    %127 = vector.broadcast %126 : vector<1x128xf32> to vector<50x128xf32>
    %128 = arith.subf %122, %127 : vector<50x128xf32>
    %129 = arith.mulf %128, %128 : vector<50x128xf32>
    %cst_54 = arith.constant dense<0.000000e+00> : vector<128xf32>
    %130 = vector.multi_reduction <add>, %129, %cst_54 [0] : vector<50x128xf32> to vector<128xf32>
    %131 = vector.shape_cast %130 : vector<128xf32> to vector<1x128xf32>
    %cst_55 = arith.constant 5.000000e+01 : f32
    %132 = vector.broadcast %cst_55 : f32 to vector<1x128xf32>
    %133 = arith.divf %131, %132 : vector<1x128xf32>
    %134 = vector.broadcast %126 : vector<1x128xf32> to vector<50x128xf32>
    %135 = arith.subf %122, %134 : vector<50x128xf32>
    %cst_56 = arith.constant 9.99999974E-6 : f32
    %136 = vector.broadcast %cst_56 : f32 to vector<1x128xf32>
    %137 = arith.addf %133, %136 : vector<1x128xf32>
    %138 = math.rsqrt %137 : vector<1x128xf32>
    %139 = vector.broadcast %138 : vector<1x128xf32> to vector<50x128xf32>
    %140 = arith.mulf %135, %139 : vector<50x128xf32>
    %141 = vector.broadcast %3 : vector<50x1xf32> to vector<50x128xf32>
    %142 = arith.mulf %140, %141 : vector<50x128xf32>
    %143 = vector.broadcast %4 : vector<50x1xf32> to vector<50x128xf32>
    %144 = arith.addf %142, %143 : vector<50x128xf32>
    %c0_57 = arith.constant 0 : index
    %c0_58 = arith.constant 0 : index
    %145 = vector.load %arg3[%c0_57, %c0_58] : memref<50x50xf32, #tpu.memory_space<vmem>>, vector<50x50xf32>
    %cst_59 = arith.constant dense<0.000000e+00> : vector<50x128xf32>
    %146 = tpu.matmul %145, %144, %cst_59 {dimension_numbers = #tpu.dot_dimension_numbers<[1], [0], [0], [1], [0, 0, 1, 1], [], []>} : vector<50x50xf32>, vector<50x128xf32>, vector<50x128xf32> -> vector<50x128xf32>
    %147 = vector.broadcast %5 : vector<50x1xf32> to vector<50x128xf32>
    %148 = arith.addf %146, %147 : vector<50x128xf32>
    %cst_60 = arith.constant 0.000000e+00 : f32
    %149 = vector.broadcast %cst_60 : f32 to vector<50x128xf32>
    %cst_61 = arith.constant 0.000000e+00 : f32
    %150 = vector.broadcast %cst_61 : f32 to vector<50x128xf32>
    %cst_62 = arith.constant 2.94235587 : f32
    %151 = vector.broadcast %cst_62 : f32 to vector<50x128xf32>
    %152 = arith.subf %148, %151 : vector<50x128xf32>
    %cst_63 = arith.constant 0.000000e+00 : f32
    %153 = vector.broadcast %cst_63 : f32 to vector<50x128xf32>
    %154 = arith.cmpf oeq, %152, %153 : vector<50x128xf32>
    %cst_64 = arith.constant 9.99999996E-13 : f32
    %155 = vector.broadcast %cst_64 : f32 to vector<50x128xf32>
    %156 = arith.select %154, %155, %152 : vector<50x128xi1>, vector<50x128xf32>
    %157 = tpu.reciprocal %156 {approx = true} : vector<50x128xf32> -> vector<50x128xf32>
    %cst_65 = arith.constant 1.940080e-01 : f32
    %158 = vector.broadcast %cst_65 : f32 to vector<50x128xf32>
    %159 = arith.mulf %158, %157 : vector<50x128xf32>
    %160 = arith.addf %149, %159 : vector<50x128xf32>
    %cst_66 = arith.constant 0.195090324 : f32
    %161 = vector.broadcast %cst_66 : f32 to vector<50x128xf32>
    %162 = arith.mulf %161, %157 : vector<50x128xf32>
    %163 = arith.addf %150, %162 : vector<50x128xf32>
    %cst_67 = arith.constant 2.49440885 : f32
    %164 = vector.broadcast %cst_67 : f32 to vector<50x128xf32>
    %165 = arith.subf %148, %164 : vector<50x128xf32>
    %cst_68 = arith.constant 0.000000e+00 : f32
    %166 = vector.broadcast %cst_68 : f32 to vector<50x128xf32>
    %167 = arith.cmpf oeq, %165, %166 : vector<50x128xf32>
    %cst_69 = arith.constant 9.99999996E-13 : f32
    %168 = vector.broadcast %cst_69 : f32 to vector<50x128xf32>
    %169 = arith.select %167, %168, %165 : vector<50x128xi1>, vector<50x128xf32>
    %170 = tpu.reciprocal %169 {approx = true} : vector<50x128xf32> -> vector<50x128xf32>
    %cst_70 = arith.constant -0.548050463 : f32
    %171 = vector.broadcast %cst_70 : f32 to vector<50x128xf32>
    %172 = arith.mulf %171, %170 : vector<50x128xf32>
    %173 = arith.addf %160, %172 : vector<50x128xf32>
    %cst_71 = arith.constant -0.555570245 : f32
    %174 = vector.broadcast %cst_71 : f32 to vector<50x128xf32>
    %175 = arith.mulf %174, %170 : vector<50x128xf32>
    %176 = arith.addf %163, %175 : vector<50x128xf32>
    %cst_72 = arith.constant 1.66671073 : f32
    %177 = vector.broadcast %cst_72 : f32 to vector<50x128xf32>
    %178 = arith.subf %148, %177 : vector<50x128xf32>
    %cst_73 = arith.constant 0.000000e+00 : f32
    %179 = vector.broadcast %cst_73 : f32 to vector<50x128xf32>
    %180 = arith.cmpf oeq, %178, %179 : vector<50x128xf32>
    %cst_74 = arith.constant 9.99999996E-13 : f32
    %181 = vector.broadcast %cst_74 : f32 to vector<50x128xf32>
    %182 = arith.select %180, %181, %178 : vector<50x128xi1>, vector<50x128xf32>
    %183 = tpu.reciprocal %182 {approx = true} : vector<50x128xf32> -> vector<50x128xf32>
    %cst_75 = arith.constant 0.77419418 : f32
    %184 = vector.broadcast %cst_75 : f32 to vector<50x128xf32>
    %185 = arith.mulf %184, %183 : vector<50x128xf32>
    %186 = arith.addf %173, %185 : vector<50x128xf32>
    %cst_76 = arith.constant 0.831469595 : f32
    %187 = vector.broadcast %cst_76 : f32 to vector<50x128xf32>
    %188 = arith.mulf %187, %183 : vector<50x128xf32>
    %189 = arith.addf %176, %188 : vector<50x128xf32>
    %cst_77 = arith.constant 0.585270941 : f32
    %190 = vector.broadcast %cst_77 : f32 to vector<50x128xf32>
    %191 = arith.subf %148, %190 : vector<50x128xf32>
    %cst_78 = arith.constant 0.000000e+00 : f32
    %192 = vector.broadcast %cst_78 : f32 to vector<50x128xf32>
    %193 = arith.cmpf oeq, %191, %192 : vector<50x128xf32>
    %cst_79 = arith.constant 9.99999996E-13 : f32
    %194 = vector.broadcast %cst_79 : f32 to vector<50x128xf32>
    %195 = arith.select %193, %194, %191 : vector<50x128xi1>, vector<50x128xf32>
    %196 = tpu.reciprocal %195 {approx = true} : vector<50x128xf32> -> vector<50x128xf32>
    %cst_80 = arith.constant -0.516369641 : f32
    %197 = vector.broadcast %cst_80 : f32 to vector<50x128xf32>
    %198 = arith.mulf %197, %196 : vector<50x128xf32>
    %199 = arith.addf %186, %198 : vector<50x128xf32>
    %cst_81 = arith.constant -0.98078525 : f32
    %200 = vector.broadcast %cst_81 : f32 to vector<50x128xf32>
    %201 = arith.mulf %200, %196 : vector<50x128xf32>
    %202 = arith.addf %189, %201 : vector<50x128xf32>
    %cst_82 = arith.constant -0.585270941 : f32
    %203 = vector.broadcast %cst_82 : f32 to vector<50x128xf32>
    %204 = arith.subf %148, %203 : vector<50x128xf32>
    %cst_83 = arith.constant 0.000000e+00 : f32
    %205 = vector.broadcast %cst_83 : f32 to vector<50x128xf32>
    %206 = arith.cmpf oeq, %204, %205 : vector<50x128xf32>
    %cst_84 = arith.constant 9.99999996E-13 : f32
    %207 = vector.broadcast %cst_84 : f32 to vector<50x128xf32>
    %208 = arith.select %206, %207, %204 : vector<50x128xi1>, vector<50x128xf32>
    %209 = tpu.reciprocal %208 {approx = true} : vector<50x128xf32> -> vector<50x128xf32>
    %cst_85 = arith.constant -0.516369641 : f32
    %210 = vector.broadcast %cst_85 : f32 to vector<50x128xf32>
    %211 = arith.mulf %210, %209 : vector<50x128xf32>
    %212 = arith.addf %199, %211 : vector<50x128xf32>
    %cst_86 = arith.constant 0.98078525 : f32
    %213 = vector.broadcast %cst_86 : f32 to vector<50x128xf32>
    %214 = arith.mulf %213, %209 : vector<50x128xf32>
    %215 = arith.addf %202, %214 : vector<50x128xf32>
    %cst_87 = arith.constant -1.66671073 : f32
    %216 = vector.broadcast %cst_87 : f32 to vector<50x128xf32>
    %217 = arith.subf %148, %216 : vector<50x128xf32>
    %cst_88 = arith.constant 0.000000e+00 : f32
    %218 = vector.broadcast %cst_88 : f32 to vector<50x128xf32>
    %219 = arith.cmpf oeq, %217, %218 : vector<50x128xf32>
    %cst_89 = arith.constant 9.99999996E-13 : f32
    %220 = vector.broadcast %cst_89 : f32 to vector<50x128xf32>
    %221 = arith.select %219, %220, %217 : vector<50x128xi1>, vector<50x128xf32>
    %222 = tpu.reciprocal %221 {approx = true} : vector<50x128xf32> -> vector<50x128xf32>
    %cst_90 = arith.constant 0.77419418 : f32
    %223 = vector.broadcast %cst_90 : f32 to vector<50x128xf32>
    %224 = arith.mulf %223, %222 : vector<50x128xf32>
    %225 = arith.addf %212, %224 : vector<50x128xf32>
    %cst_91 = arith.constant -0.831469595 : f32
    %226 = vector.broadcast %cst_91 : f32 to vector<50x128xf32>
    %227 = arith.mulf %226, %222 : vector<50x128xf32>
    %228 = arith.addf %215, %227 : vector<50x128xf32>
    %cst_92 = arith.constant -2.49440885 : f32
    %229 = vector.broadcast %cst_92 : f32 to vector<50x128xf32>
    %230 = arith.subf %148, %229 : vector<50x128xf32>
    %cst_93 = arith.constant 0.000000e+00 : f32
    %231 = vector.broadcast %cst_93 : f32 to vector<50x128xf32>
    %232 = arith.cmpf oeq, %230, %231 : vector<50x128xf32>
    %cst_94 = arith.constant 9.99999996E-13 : f32
    %233 = vector.broadcast %cst_94 : f32 to vector<50x128xf32>
    %234 = arith.select %232, %233, %230 : vector<50x128xi1>, vector<50x128xf32>
    %235 = tpu.reciprocal %234 {approx = true} : vector<50x128xf32> -> vector<50x128xf32>
    %cst_95 = arith.constant -0.548050463 : f32
    %236 = vector.broadcast %cst_95 : f32 to vector<50x128xf32>
    %237 = arith.mulf %236, %235 : vector<50x128xf32>
    %238 = arith.addf %225, %237 : vector<50x128xf32>
    %cst_96 = arith.constant 0.555570245 : f32
    %239 = vector.broadcast %cst_96 : f32 to vector<50x128xf32>
    %240 = arith.mulf %239, %235 : vector<50x128xf32>
    %241 = arith.addf %228, %240 : vector<50x128xf32>
    %cst_97 = arith.constant -2.94235587 : f32
    %242 = vector.broadcast %cst_97 : f32 to vector<50x128xf32>
    %243 = arith.subf %148, %242 : vector<50x128xf32>
    %cst_98 = arith.constant 0.000000e+00 : f32
    %244 = vector.broadcast %cst_98 : f32 to vector<50x128xf32>
    %245 = arith.cmpf oeq, %243, %244 : vector<50x128xf32>
    %cst_99 = arith.constant 9.99999996E-13 : f32
    %246 = vector.broadcast %cst_99 : f32 to vector<50x128xf32>
    %247 = arith.select %245, %246, %243 : vector<50x128xi1>, vector<50x128xf32>
    %248 = tpu.reciprocal %247 {approx = true} : vector<50x128xf32> -> vector<50x128xf32>
    %cst_100 = arith.constant 1.940080e-01 : f32
    %249 = vector.broadcast %cst_100 : f32 to vector<50x128xf32>
    %250 = arith.mulf %249, %248 : vector<50x128xf32>
    %251 = arith.addf %238, %250 : vector<50x128xf32>
    %cst_101 = arith.constant -0.195090324 : f32
    %252 = vector.broadcast %cst_101 : f32 to vector<50x128xf32>
    %253 = arith.mulf %252, %248 : vector<50x128xf32>
    %254 = arith.addf %241, %253 : vector<50x128xf32>
    %255 = tpu.reciprocal %254 {approx = true} : vector<50x128xf32> -> vector<50x128xf32>
    %256 = arith.mulf %251, %255 : vector<50x128xf32>
    %cst_102 = arith.constant dense<0.000000e+00> : vector<128xf32>
    %257 = vector.multi_reduction <add>, %256, %cst_102 [0] : vector<50x128xf32> to vector<128xf32>
    %258 = vector.shape_cast %257 : vector<128xf32> to vector<1x128xf32>
    %cst_103 = arith.constant 5.000000e+01 : f32
    %259 = vector.broadcast %cst_103 : f32 to vector<1x128xf32>
    %260 = arith.divf %258, %259 : vector<1x128xf32>
    %261 = vector.broadcast %260 : vector<1x128xf32> to vector<50x128xf32>
    %262 = arith.subf %256, %261 : vector<50x128xf32>
    %263 = arith.mulf %262, %262 : vector<50x128xf32>
    %cst_104 = arith.constant dense<0.000000e+00> : vector<128xf32>
    %264 = vector.multi_reduction <add>, %263, %cst_104 [0] : vector<50x128xf32> to vector<128xf32>
    %265 = vector.shape_cast %264 : vector<128xf32> to vector<1x128xf32>
    %cst_105 = arith.constant 5.000000e+01 : f32
    %266 = vector.broadcast %cst_105 : f32 to vector<1x128xf32>
    %267 = arith.divf %265, %266 : vector<1x128xf32>
    %268 = vector.broadcast %260 : vector<1x128xf32> to vector<50x128xf32>
    %269 = arith.subf %256, %268 : vector<50x128xf32>
    %cst_106 = arith.constant 9.99999974E-6 : f32
    %270 = vector.broadcast %cst_106 : f32 to vector<1x128xf32>
    %271 = arith.addf %267, %270 : vector<1x128xf32>
    %272 = math.rsqrt %271 : vector<1x128xf32>
    %273 = vector.broadcast %272 : vector<1x128xf32> to vector<50x128xf32>
    %274 = arith.mulf %269, %273 : vector<50x128xf32>
    %275 = vector.broadcast %6 : vector<50x1xf32> to vector<50x128xf32>
    %276 = arith.mulf %274, %275 : vector<50x128xf32>
    %277 = vector.broadcast %7 : vector<50x1xf32> to vector<50x128xf32>
    %278 = arith.addf %276, %277 : vector<50x128xf32>
    %279 = vector.broadcast %8 : vector<50x1xf32> to vector<50x128xf32>
    %280 = arith.mulf %278, %279 : vector<50x128xf32>
    %cst_107 = arith.constant dense<0.000000e+00> : vector<128xf32>
    %281 = vector.multi_reduction <add>, %280, %cst_107 [0] : vector<50x128xf32> to vector<128xf32>
    %282 = vector.shape_cast %281 : vector<128xf32> to vector<1x128xf32>
    %283 = vector.broadcast %9 : vector<1x1xf32> to vector<1x128xf32>
    %284 = arith.addf %282, %283 : vector<1x128xf32>
    %c0_108 = arith.constant 0 : index
    %c0_109 = arith.constant 0 : index
    %285 = vector.load %arg4[%c0_108, %c0_109] : memref<1x128xf32, #tpu.memory_space<vmem>>, vector<1x128xf32>
    tpu.vector_store %arg4[%c0_108, %c0_109], %284 {strides = array<i32>} : memref<1x128xf32, #tpu.memory_space<vmem>>, vector<1x128xf32>,
    return
  }
  func.func @transform_0(%arg0: i32) -> (i32, i32) {
    %c0_i32 = arith.constant 0 : i32
    %c0_i32_0 = arith.constant 0 : i32
    return %c0_i32, %arg0 : i32, i32
  }
  func.func @transform_1(%arg0: i32) -> (i32, i32) {
    %c0_i32 = arith.constant 0 : i32
    %c0_i32_0 = arith.constant 0 : i32
    %c0_i32_1 = arith.constant 0 : i32
    return %c0_i32, %c0_i32_0 : i32, i32
  }
  func.func @transform_2(%arg0: i32) -> (i32, i32) {
    %c0_i32 = arith.constant 0 : i32
    %c0_i32_0 = arith.constant 0 : i32
    %c0_i32_1 = arith.constant 0 : i32
    return %c0_i32, %c0_i32_0 : i32, i32
  }
  func.func @transform_3(%arg0: i32) -> (i32, i32) {
    %c0_i32 = arith.constant 0 : i32
    %c0_i32_0 = arith.constant 0 : i32
    return %c0_i32, %arg0 : i32, i32
  }
}

</mosaic_0001>

<llo_original>
// kernel: tpu_custom_call.1
$region0: #{tpu_custom_call.1}
  #allocation0 [shape = 'u32[]', space=smem, size = 0x4, offset = 0x4, fixed_abs, tag = 'smem constant byte address 0x4 - core index']
  #allocation1 [shape = 'u32[144,128]{1,0:T(1,128)}', space=vmem, size = 0x12000, scoped, tag = 'internal scratch']
  %s0 = inlined_call_operand.vmem [shape: f32[1,128], index: 0, kind: input, shape index: {}]
  %s1 = inlined_call_operand.vmem [shape: f32[50,9], index: 1, kind: input, shape index: {}]
  %s2 = inlined_call_operand.vmem [shape: f32[50,50], index: 2, kind: input, shape index: {}]
  %s3 = inlined_call_operand.hbm [shape: f32[1,128], index: 3, kind: output, shape index: {}]
  %s4 = sld [smem:[#allocation0]]
  $region22: #{tpu_custom_call.1} parent=0
    _
  %s6 = ssub.s32 1, %s4
  %s7 = scalar_select 0, %s6, %s4
  $region1: #{tpu_custom_call.1} parent=0
    #allocation2 [shape = 'u8[512]{0}', space=vmem, size = 0x400, scoped, tag = 'output window, operand 0, single buffered']
    #allocation3 [shape = 's32[1]{0}', space=sflag, size = 0x4, scoped, tag = 'scoped memory for tpu_custom_call.1']
    %8 = vsyncpa [#allocation3], 0
    // Predicated region
    $region2: #{tpu_custom_call.1} parent=1 // pred_check
      _
    $region3: #{tpu_custom_call.1} parent=1 // pred_check_branch
      %10 = sbr.rel (0) target = $region5
    $region4: #{tpu_custom_call.1} parent=1 // pred_region
      _
    $region5: #{tpu_custom_call.1} parent=1 // pred_fallthru
      _
    // Predicated region
    $region6: #{tpu_custom_call.1} parent=1 // pred_check
      _
    $region7: #{tpu_custom_call.1} parent=1 // pred_check_branch
      %12 = sbr.rel (0) target = $region9
    $region8: #{tpu_custom_call.1} parent=1 // pred_region
      _
    $region9: #{tpu_custom_call.1} parent=1 // pred_fallthru
      _
    // Predicated region
    $region10: #{tpu_custom_call.1} parent=1 // pred_check
      _
    $region11: #{tpu_custom_call.1} parent=1 // pred_check_branch
      %14 = sbr.rel (0) target = $region13
    $region12: #{tpu_custom_call.1} parent=1 // pred_region
      _
    $region13: #{tpu_custom_call.1} parent=1 // pred_fallthru
      _
    %v15 = vld [vmem:[%s0] sm:$0x1]
    %v16 = vld [vmem:[%s1] sm:$0xff]
    %v17 = vld [vmem:[%s1 + $0x8] sm:$0xff]
    %v18 = vld [vmem:[%s1 + $0x10] sm:$0xff]
    %v19 = vld [vmem:[%s1 + $0x18] sm:$0xff]
    %v20 = vld [vmem:[%s1 + $0x20] sm:$0xff]
    %v21 = vld [vmem:[%s1 + $0x28] sm:$0xff]
    %v22 = vld [vmem:[%s1 + $0x30] sm:$0x3]
    %v23 = vld [vmem:[%s1] sm:$0x1]
    %25 = vset.pattern.permute.xlu0 0
    %26 = vperm.xlu0 %25, %v16
    %v27 = vpop.permute.xlu0 %26
    %30 = vset.pattern.permute.xlu0 0
    %31 = vperm.xlu0 %30, %v17
    %v32 = vpop.permute.xlu0 %31
    %35 = vset.pattern.permute.xlu0 0
    %36 = vperm.xlu0 %35, %v18
    %v37 = vpop.permute.xlu0 %36
    %40 = vset.pattern.permute.xlu0 0
    %41 = vperm.xlu0 %40, %v19
    %v42 = vpop.permute.xlu0 %41
    %45 = vset.pattern.permute.xlu0 0
    %46 = vperm.xlu0 %45, %v20
    %v47 = vpop.permute.xlu0 %46
    %50 = vset.pattern.permute.xlu0 0
    %51 = vperm.xlu0 %50, %v21
    %v52 = vpop.permute.xlu0 %51
    %55 = vset.pattern.permute.xlu0 0
    %56 = vperm.xlu0 %55, %v22
    %v57 = vpop.permute.xlu0 %56
    %v60 = vlaneseq
    %v61 = vshrl.u32 %v60, 7
    %v62 = vsub.s32 0, %v61
    %v63 = vrot.slane %v15, %v62
    %v65 = vmul.f32 %v27, %v63
    %v66 = vmul.f32 %v32, %v63
    %v67 = vmul.f32 %v37, %v63
    %v68 = vmul.f32 %v42, %v63
    %v69 = vmul.f32 %v47, %v63
    %v70 = vmul.f32 %v52, %v63
    %v71 = vmul.f32 %v57, %v63
    %72 = vset.pattern.permute.xlu0 1
    %73 = vperm.xlu0 %72, %v16
    %v74 = vpop.permute.xlu0 %73
    %76 = vset.pattern.permute.xlu0 1
    %77 = vperm.xlu0 %76, %v17
    %v78 = vpop.permute.xlu0 %77
    %80 = vset.pattern.permute.xlu0 1
    %81 = vperm.xlu0 %80, %v18
    %v82 = vpop.permute.xlu0 %81
    %84 = vset.pattern.permute.xlu0 1
    %85 = vperm.xlu0 %84, %v19
    %v86 = vpop.permute.xlu0 %85
    %88 = vset.pattern.permute.xlu0 1
    %89 = vperm.xlu0 %88, %v20
    %v90 = vpop.permute.xlu0 %89
    %92 = vset.pattern.permute.xlu0 1
    %93 = vperm.xlu0 %92, %v21
    %v94 = vpop.permute.xlu0 %93
    %96 = vset.pattern.permute.xlu0 1
    %97 = vperm.xlu0 %96, %v22
    %v98 = vpop.permute.xlu0 %97
    %v100 = vadd.f32 %v65, %v74
    %v101 = vadd.f32 %v66, %v78
    %v102 = vadd.f32 %v67, %v82
    %v103 = vadd.f32 %v68, %v86
    %v104 = vadd.f32 %v69, %v90
    %v105 = vadd.f32 %v70, %v94
    %v106 = vadd.f32 %v71, %v98
    %v107 = vsub.f32 %v100, 2.9423559
    %v108 = vsub.f32 %v101, 2.9423559
    %v109 = vsub.f32 %v102, 2.9423559
    %v110 = vsub.f32 %v103, 2.9423559
    %v111 = vsub.f32 %v104, 2.9423559
    %v112 = vsub.f32 %v105, 2.9423559
    %v113 = vsub.f32 %v106, 2.9423559
    %vm114 = vcmp.eq.f32.partialorder %v107, 0.0
    %vm115 = vcmp.eq.f32.partialorder %v108, 0.0
    %vm116 = vcmp.eq.f32.partialorder %v109, 0.0
    %vm117 = vcmp.eq.f32.partialorder %v110, 0.0
    %vm118 = vcmp.eq.f32.partialorder %v111, 0.0
    %vm119 = vcmp.eq.f32.partialorder %v112, 0.0
    %vm120 = vcmp.eq.f32.partialorder %v113, 0.0
    %v121 = vsel %vm114, 1e-12, %v107
    %v122 = vsel %vm115, 1e-12, %v108
    %v123 = vsel %vm116, 1e-12, %v109
    %v124 = vsel %vm117, 1e-12, %v110
    %v125 = vsel %vm118, 1e-12, %v111
    %v126 = vsel %vm119, 1e-12, %v112
    %v127 = vsel %vm120, 1e-12, %v113
    %v128 = vrcp.pop %v121
    %v129 = vrcp.pop %v122
    %v130 = vrcp.pop %v123
    %v131 = vrcp.pop %v124
    %v132 = vrcp.pop %v125
    %v133 = vrcp.pop %v126
    %v134 = vrcp.pop %v127
    %v135 = vmul.f32 %v128, 0.194008
    %v136 = vmul.f32 %v129, 0.194008
    %v137 = vmul.f32 %v130, 0.194008
    %v138 = vmul.f32 %v131, 0.194008
    %v139 = vmul.f32 %v132, 0.194008
    %v140 = vmul.f32 %v133, 0.194008
    %v141 = vmul.f32 %v134, 0.194008
    %v142 = vadd.f32 %v135, 0.0
    %v143 = vadd.f32 %v136, 0.0
    %v144 = vadd.f32 %v137, 0.0
    %v145 = vadd.f32 %v138, 0.0
    %v146 = vadd.f32 %v139, 0.0
    %v147 = vadd.f32 %v140, 0.0
    %v148 = vadd.f32 %v141, 0.0
    %v149 = vmul.f32 %v128, 0.19509032
    %v150 = vmul.f32 %v129, 0.19509032
    %v151 = vmul.f32 %v130, 0.19509032
    %v152 = vmul.f32 %v131, 0.19509032
    %v153 = vmul.f32 %v132, 0.19509032
    %v154 = vmul.f32 %v133, 0.19509032
    %v155 = vmul.f32 %v134, 0.19509032
    %v156 = vadd.f32 %v149, 0.0
    %v157 = vadd.f32 %v150, 0.0
    %v158 = vadd.f32 %v151, 0.0
    %v159 = vadd.f32 %v152, 0.0
    %v160 = vadd.f32 %v153, 0.0
    %v161 = vadd.f32 %v154, 0.0
    %v162 = vadd.f32 %v155, 0.0
    %v163 = vsub.f32 %v100, 2.4944088
    %v164 = vsub.f32 %v101, 2.4944088
    %v165 = vsub.f32 %v102, 2.4944088
    %v166 = vsub.f32 %v103, 2.4944088
    %v167 = vsub.f32 %v104, 2.4944088
    %v168 = vsub.f32 %v105, 2.4944088
    %v169 = vsub.f32 %v106, 2.4944088
    %vm170 = vcmp.eq.f32.partialorder %v163, 0.0
    %vm171 = vcmp.eq.f32.partialorder %v164, 0.0
    %vm172 = vcmp.eq.f32.partialorder %v165, 0.0
    %vm173 = vcmp.eq.f32.partialorder %v166, 0.0
    %vm174 = vcmp.eq.f32.partialorder %v167, 0.0
    %vm175 = vcmp.eq.f32.partialorder %v168, 0.0
    %vm176 = vcmp.eq.f32.partialorder %v169, 0.0
    %v177 = vsel %vm170, 1e-12, %v163
    %v178 = vsel %vm171, 1e-12, %v164
    %v179 = vsel %vm172, 1e-12, %v165
    %v180 = vsel %vm173, 1e-12, %v166
    %v181 = vsel %vm174, 1e-12, %v167
    %v182 = vsel %vm175, 1e-12, %v168
    %v183 = vsel %vm176, 1e-12, %v169
    %v184 = vrcp.pop %v177
    %v185 = vrcp.pop %v178
    %v186 = vrcp.pop %v179
    %v187 = vrcp.pop %v180
    %v188 = vrcp.pop %v181
    %v189 = vrcp.pop %v182
    %v190 = vrcp.pop %v183
    %v191 = vmul.f32 %v184, -0.54805046
    %v192 = vmul.f32 %v185, -0.54805046
    %v193 = vmul.f32 %v186, -0.54805046
    %v194 = vmul.f32 %v187, -0.54805046
    %v195 = vmul.f32 %v188, -0.54805046
    %v196 = vmul.f32 %v189, -0.54805046
    %v197 = vmul.f32 %v190, -0.54805046
    %v198 = vadd.f32 %v142, %v191
    %v199 = vadd.f32 %v143, %v192
    %v200 = vadd.f32 %v144, %v193
    %v201 = vadd.f32 %v145, %v194
    %v202 = vadd.f32 %v146, %v195
    %v203 = vadd.f32 %v147, %v196
    %v204 = vadd.f32 %v148, %v197
    %v205 = vmul.f32 %v184, -0.55557024
    %v206 = vmul.f32 %v185, -0.55557024
    %v207 = vmul.f32 %v186, -0.55557024
    %v208 = vmul.f32 %v187, -0.55557024
    %v209 = vmul.f32 %v188, -0.55557024
    %v210 = vmul.f32 %v189, -0.55557024
    %v211 = vmul.f32 %v190, -0.55557024
    %v212 = vadd.f32 %v156, %v205
    %v213 = vadd.f32 %v157, %v206
    %v214 = vadd.f32 %v158, %v207
    %v215 = vadd.f32 %v159, %v208
    %v216 = vadd.f32 %v160, %v209
    %v217 = vadd.f32 %v161, %v210
    %v218 = vadd.f32 %v162, %v211
    %v219 = vsub.f32 %v100, 1.6667107
    %v220 = vsub.f32 %v101, 1.6667107
    %v221 = vsub.f32 %v102, 1.6667107
    %v222 = vsub.f32 %v103, 1.6667107
    %v223 = vsub.f32 %v104, 1.6667107
    %v224 = vsub.f32 %v105, 1.6667107
    %v225 = vsub.f32 %v106, 1.6667107
    %vm226 = vcmp.eq.f32.partialorder %v219, 0.0
    %vm227 = vcmp.eq.f32.partialorder %v220, 0.0
    %vm228 = vcmp.eq.f32.partialorder %v221, 0.0
    %vm229 = vcmp.eq.f32.partialorder %v222, 0.0
    %vm230 = vcmp.eq.f32.partialorder %v223, 0.0
    %vm231 = vcmp.eq.f32.partialorder %v224, 0.0
    %vm232 = vcmp.eq.f32.partialorder %v225, 0.0
    %v233 = vsel %vm226, 1e-12, %v219
    %v234 = vsel %vm227, 1e-12, %v220
    %v235 = vsel %vm228, 1e-12, %v221
    %v236 = vsel %vm229, 1e-12, %v222
    %v237 = vsel %vm230, 1e-12, %v223
    %v238 = vsel %vm231, 1e-12, %v224
    %v239 = vsel %vm232, 1e-12, %v225
    %v240 = vrcp.pop %v233
    %v241 = vrcp.pop %v234
    %v242 = vrcp.pop %v235
    %v243 = vrcp.pop %v236
    %v244 = vrcp.pop %v237
    %v245 = vrcp.pop %v238
    %v246 = vrcp.pop %v239
    %v247 = vmul.f32 %v240, 0.7741942
    %v248 = vmul.f32 %v241, 0.7741942
    %v249 = vmul.f32 %v242, 0.7741942
    %v250 = vmul.f32 %v243, 0.7741942
    %v251 = vmul.f32 %v244, 0.7741942
    %v252 = vmul.f32 %v245, 0.7741942
    %v253 = vmul.f32 %v246, 0.7741942
    %v254 = vadd.f32 %v198, %v247
    %v255 = vadd.f32 %v199, %v248
    %v256 = vadd.f32 %v200, %v249
    %v257 = vadd.f32 %v201, %v250
    %v258 = vadd.f32 %v202, %v251
    %v259 = vadd.f32 %v203, %v252
    %v260 = vadd.f32 %v204, %v253
    %v261 = vmul.f32 %v240, 0.8314696
    %v262 = vmul.f32 %v241, 0.8314696
    %v263 = vmul.f32 %v242, 0.8314696
    %v264 = vmul.f32 %v243, 0.8314696
    %v265 = vmul.f32 %v244, 0.8314696
    %v266 = vmul.f32 %v245, 0.8314696
    %v267 = vmul.f32 %v246, 0.8314696
    %v268 = vadd.f32 %v212, %v261
    %v269 = vadd.f32 %v213, %v262
    %v270 = vadd.f32 %v214, %v263
    %v271 = vadd.f32 %v215, %v264
    %v272 = vadd.f32 %v216, %v265
    %v273 = vadd.f32 %v217, %v266
    %v274 = vadd.f32 %v218, %v267
    %v275 = vsub.f32 %v100, 0.58527094
    %v276 = vsub.f32 %v101, 0.58527094
    %v277 = vsub.f32 %v102, 0.58527094
    %v278 = vsub.f32 %v103, 0.58527094
    %v279 = vsub.f32 %v104, 0.58527094
    %v280 = vsub.f32 %v105, 0.58527094
    %v281 = vsub.f32 %v106, 0.58527094
    %vm282 = vcmp.eq.f32.partialorder %v275, 0.0
    %vm283 = vcmp.eq.f32.partialorder %v276, 0.0
    %vm284 = vcmp.eq.f32.partialorder %v277, 0.0
    %vm285 = vcmp.eq.f32.partialorder %v278, 0.0
    %vm286 = vcmp.eq.f32.partialorder %v279, 0.0
    %vm287 = vcmp.eq.f32.partialorder %v280, 0.0
    %vm288 = vcmp.eq.f32.partialorder %v281, 0.0
    %v289 = vsel %vm282, 1e-12, %v275
    %v290 = vsel %vm283, 1e-12, %v276
    %v291 = vsel %vm284, 1e-12, %v277
    %v292 = vsel %vm285, 1e-12, %v278
    %v293 = vsel %vm286, 1e-12, %v279
    %v294 = vsel %vm287, 1e-12, %v280
    %v295 = vsel %vm288, 1e-12, %v281
    %v296 = vrcp.pop %v289
    %v297 = vrcp.pop %v290
    %v298 = vrcp.pop %v291
    %v299 = vrcp.pop %v292
    %v300 = vrcp.pop %v293
    %v301 = vrcp.pop %v294
    %v302 = vrcp.pop %v295
    %v303 = vmul.f32 %v296, -0.51636964
    %v304 = vmul.f32 %v297, -0.51636964
    %v305 = vmul.f32 %v298, -0.51636964
    %v306 = vmul.f32 %v299, -0.51636964
    %v307 = vmul.f32 %v300, -0.51636964
    %v308 = vmul.f32 %v301, -0.51636964
    %v309 = vmul.f32 %v302, -0.51636964
    %v310 = vadd.f32 %v254, %v303
    %v311 = vadd.f32 %v255, %v304
    %v312 = vadd.f32 %v256, %v305
    %v313 = vadd.f32 %v257, %v306
    %v314 = vadd.f32 %v258, %v307
    %v315 = vadd.f32 %v259, %v308
    %v316 = vadd.f32 %v260, %v309
    %v317 = vmul.f32 %v296, -0.98078525
    %v318 = vmul.f32 %v297, -0.98078525
    %v319 = vmul.f32 %v298, -0.98078525
    %v320 = vmul.f32 %v299, -0.98078525
    %v321 = vmul.f32 %v300, -0.98078525
    %v322 = vmul.f32 %v301, -0.98078525
    %v323 = vmul.f32 %v302, -0.98078525
    %v324 = vadd.f32 %v268, %v317
    %v325 = vadd.f32 %v269, %v318
    %v326 = vadd.f32 %v270, %v319
    %v327 = vadd.f32 %v271, %v320
    %v328 = vadd.f32 %v272, %v321
    %v329 = vadd.f32 %v273, %v322
    %v330 = vadd.f32 %v274, %v323
    %v331 = vsub.f32 %v100, -0.58527094
    %v332 = vsub.f32 %v101, -0.58527094
    %v333 = vsub.f32 %v102, -0.58527094
    %v334 = vsub.f32 %v103, -0.58527094
    %v335 = vsub.f32 %v104, -0.58527094
    %v336 = vsub.f32 %v105, -0.58527094
    %v337 = vsub.f32 %v106, -0.58527094
    %vm338 = vcmp.eq.f32.partialorder %v331, 0.0
    %vm339 = vcmp.eq.f32.partialorder %v332, 0.0
    %vm340 = vcmp.eq.f32.partialorder %v333, 0.0
    %vm341 = vcmp.eq.f32.partialorder %v334, 0.0
    %vm342 = vcmp.eq.f32.partialorder %v335, 0.0
    %vm343 = vcmp.eq.f32.partialorder %v336, 0.0
    %vm344 = vcmp.eq.f32.partialorder %v337, 0.0
    %v345 = vsel %vm338, 1e-12, %v331
    %v346 = vsel %vm339, 1e-12, %v332
    %v347 = vsel %vm340, 1e-12, %v333
    %v348 = vsel %vm341, 1e-12, %v334
    %v349 = vsel %vm342, 1e-12, %v335
    %v350 = vsel %vm343, 1e-12, %v336
    %v351 = vsel %vm344, 1e-12, %v337
    %v352 = vrcp.pop %v345
    %v353 = vrcp.pop %v346
    %v354 = vrcp.pop %v347
    %v355 = vrcp.pop %v348
    %v356 = vrcp.pop %v349
    %v357 = vrcp.pop %v350
    %v358 = vrcp.pop %v351
    %v359 = vmul.f32 %v352, -0.51636964
    %v360 = vmul.f32 %v353, -0.51636964
    %v361 = vmul.f32 %v354, -0.51636964
    %v362 = vmul.f32 %v355, -0.51636964
    %v363 = vmul.f32 %v356, -0.51636964
    %v364 = vmul.f32 %v357, -0.51636964
    %v365 = vmul.f32 %v358, -0.51636964
    %v366 = vadd.f32 %v310, %v359
    %v367 = vadd.f32 %v311, %v360
    %v368 = vadd.f32 %v312, %v361
    %v369 = vadd.f32 %v313, %v362
    %v370 = vadd.f32 %v314, %v363
    %v371 = vadd.f32 %v315, %v364
    %v372 = vadd.f32 %v316, %v365
    %v373 = vmul.f32 %v352, 0.98078525
    %v374 = vmul.f32 %v353, 0.98078525
    %v375 = vmul.f32 %v354, 0.98078525
    %v376 = vmul.f32 %v355, 0.98078525
    %v377 = vmul.f32 %v356, 0.98078525
    %v378 = vmul.f32 %v357, 0.98078525
    %v379 = vmul.f32 %v358, 0.98078525
    %v380 = vadd.f32 %v324, %v373
    %v381 = vadd.f32 %v325, %v374
    %v382 = vadd.f32 %v326, %v375
    %v383 = vadd.f32 %v327, %v376
    %v384 = vadd.f32 %v328, %v377
    %v385 = vadd.f32 %v329, %v378
    %v386 = vadd.f32 %v330, %v379
    %v387 = vsub.f32 %v100, -1.6667107
    %v388 = vsub.f32 %v101, -1.6667107
    %v389 = vsub.f32 %v102, -1.6667107
    %v390 = vsub.f32 %v103, -1.6667107
    %v391 = vsub.f32 %v104, -1.6667107
    %v392 = vsub.f32 %v105, -1.6667107
    %v393 = vsub.f32 %v106, -1.6667107
    %vm394 = vcmp.eq.f32.partialorder %v387, 0.0
    %vm395 = vcmp.eq.f32.partialorder %v388, 0.0
    %vm396 = vcmp.eq.f32.partialorder %v389, 0.0
    %vm397 = vcmp.eq.f32.partialorder %v390, 0.0
    %vm398 = vcmp.eq.f32.partialorder %v391, 0.0
    %vm399 = vcmp.eq.f32.partialorder %v392, 0.0
    %vm400 = vcmp.eq.f32.partialorder %v393, 0.0
    %v401 = vsel %vm394, 1e-12, %v387
    %v402 = vsel %vm395, 1e-12, %v388
    %v403 = vsel %vm396, 1e-12, %v389
    %v404 = vsel %vm397, 1e-12, %v390
    %v405 = vsel %vm398, 1e-12, %v391
    %v406 = vsel %vm399, 1e-12, %v392
    %v407 = vsel %vm400, 1e-12, %v393
    %v408 = vrcp.pop %v401
    %v409 = vrcp.pop %v402
    %v410 = vrcp.pop %v403
    %v411 = vrcp.pop %v404
    %v412 = vrcp.pop %v405
    %v413 = vrcp.pop %v406
    %v414 = vrcp.pop %v407
    %v415 = vmul.f32 %v408, 0.7741942
    %v416 = vmul.f32 %v409, 0.7741942
    %v417 = vmul.f32 %v410, 0.7741942
    %v418 = vmul.f32 %v411, 0.7741942
    %v419 = vmul.f32 %v412, 0.7741942
    %v420 = vmul.f32 %v413, 0.7741942
    %v421 = vmul.f32 %v414, 0.7741942
    %v422 = vadd.f32 %v366, %v415
    %v423 = vadd.f32 %v367, %v416
    %v424 = vadd.f32 %v368, %v417
    %v425 = vadd.f32 %v369, %v418
    %v426 = vadd.f32 %v370, %v419
    %v427 = vadd.f32 %v371, %v420
    %v428 = vadd.f32 %v372, %v421
    %v429 = vmul.f32 %v408, -0.8314696
    %v430 = vmul.f32 %v409, -0.8314696
    %v431 = vmul.f32 %v410, -0.8314696
    %v432 = vmul.f32 %v411, -0.8314696
    %v433 = vmul.f32 %v412, -0.8314696
    %v434 = vmul.f32 %v413, -0.8314696
    %v435 = vmul.f32 %v414, -0.8314696
    %v436 = vadd.f32 %v380, %v429
    %v437 = vadd.f32 %v381, %v430
    %v438 = vadd.f32 %v382, %v431
    %v439 = vadd.f32 %v383, %v432
    %v440 = vadd.f32 %v384, %v433
    %v441 = vadd.f32 %v385, %v434
    %v442 = vadd.f32 %v386, %v435
    %v443 = vsub.f32 %v100, -2.4944088
    %v444 = vsub.f32 %v101, -2.4944088
    %v445 = vsub.f32 %v102, -2.4944088
    %v446 = vsub.f32 %v103, -2.4944088
    %v447 = vsub.f32 %v104, -2.4944088
    %v448 = vsub.f32 %v105, -2.4944088
    %v449 = vsub.f32 %v106, -2.4944088
    %vm450 = vcmp.eq.f32.partialorder %v443, 0.0
    %vm451 = vcmp.eq.f32.partialorder %v444, 0.0
    %vm452 = vcmp.eq.f32.partialorder %v445, 0.0
    %vm453 = vcmp.eq.f32.partialorder %v446, 0.0
    %vm454 = vcmp.eq.f32.partialorder %v447, 0.0
    %vm455 = vcmp.eq.f32.partialorder %v448, 0.0
    %vm456 = vcmp.eq.f32.partialorder %v449, 0.0
    %v457 = vsel %vm450, 1e-12, %v443
    %v458 = vsel %vm451, 1e-12, %v444
    %v459 = vsel %vm452, 1e-12, %v445
    %v460 = vsel %vm453, 1e-12, %v446
    %v461 = vsel %vm454, 1e-12, %v447
    %v462 = vsel %vm455, 1e-12, %v448
    %v463 = vsel %vm456, 1e-12, %v449
    %v464 = vrcp.pop %v457
    %v465 = vrcp.pop %v458
    %v466 = vrcp.pop %v459
    %v467 = vrcp.pop %v460
    %v468 = vrcp.pop %v461
    %v469 = vrcp.pop %v462
    %v470 = vrcp.pop %v463
    %v471 = vmul.f32 %v464, -0.54805046
    %v472 = vmul.f32 %v465, -0.54805046
    %v473 = vmul.f32 %v466, -0.54805046
    %v474 = vmul.f32 %v467, -0.54805046
    %v475 = vmul.f32 %v468, -0.54805046
    %v476 = vmul.f32 %v469, -0.54805046
    %v477 = vmul.f32 %v470, -0.54805046
    %v478 = vadd.f32 %v422, %v471
    %v479 = vadd.f32 %v423, %v472
    %v480 = vadd.f32 %v424, %v473
    %v481 = vadd.f32 %v425, %v474
    %v482 = vadd.f32 %v426, %v475
    %v483 = vadd.f32 %v427, %v476
    %v484 = vadd.f32 %v428, %v477
    %v485 = vmul.f32 %v464, 0.55557024
    %v486 = vmul.f32 %v465, 0.55557024
    %v487 = vmul.f32 %v466, 0.55557024
    %v488 = vmul.f32 %v467, 0.55557024
    %v489 = vmul.f32 %v468, 0.55557024
    %v490 = vmul.f32 %v469, 0.55557024
    %v491 = vmul.f32 %v470, 0.55557024
    %v492 = vadd.f32 %v436, %v485
    %v493 = vadd.f32 %v437, %v486
    %v494 = vadd.f32 %v438, %v487
    %v495 = vadd.f32 %v439, %v488
    %v496 = vadd.f32 %v440, %v489
    %v497 = vadd.f32 %v441, %v490
    %v498 = vadd.f32 %v442, %v491
    %v499 = vsub.f32 %v100, -2.9423559
    %v500 = vsub.f32 %v101, -2.9423559
    %v501 = vsub.f32 %v102, -2.9423559
    %v502 = vsub.f32 %v103, -2.9423559
    %v503 = vsub.f32 %v104, -2.9423559
    %v504 = vsub.f32 %v105, -2.9423559
    %v505 = vsub.f32 %v106, -2.9423559
    %vm506 = vcmp.eq.f32.partialorder %v499, 0.0
    %vm507 = vcmp.eq.f32.partialorder %v500, 0.0
    %vm508 = vcmp.eq.f32.partialorder %v501, 0.0
    %vm509 = vcmp.eq.f32.partialorder %v502, 0.0
    %vm510 = vcmp.eq.f32.partialorder %v503, 0.0
    %vm511 = vcmp.eq.f32.partialorder %v504, 0.0
    %vm512 = vcmp.eq.f32.partialorder %v505, 0.0
    %v513 = vsel %vm506, 1e-12, %v499
    %v514 = vsel %vm507, 1e-12, %v500
    %v515 = vsel %vm508, 1e-12, %v501
    %v516 = vsel %vm509, 1e-12, %v502
    %v517 = vsel %vm510, 1e-12, %v503
    %v518 = vsel %vm511, 1e-12, %v504
    %v519 = vsel %vm512, 1e-12, %v505
    %v520 = vrcp.pop %v513
    %v521 = vrcp.pop %v514
    %v522 = vrcp.pop %v515
    %v523 = vrcp.pop %v516
    %v524 = vrcp.pop %v517
    %v525 = vrcp.pop %v518
    %v526 = vrcp.pop %v519
    %v527 = vmul.f32 %v520, 0.194008
    %v528 = vmul.f32 %v521, 0.194008
    %v529 = vmul.f32 %v522, 0.194008
    %v530 = vmul.f32 %v523, 0.194008
    %v531 = vmul.f32 %v524, 0.194008
    %v532 = vmul.f32 %v525, 0.194008
    %v533 = vmul.f32 %v526, 0.194008
    %v534 = vadd.f32 %v478, %v527
    %v535 = vadd.f32 %v479, %v528
    %v536 = vadd.f32 %v480, %v529
    %v537 = vadd.f32 %v481, %v530
    %v538 = vadd.f32 %v482, %v531
    %v539 = vadd.f32 %v483, %v532
    %v540 = vadd.f32 %v484, %v533
    %v541 = vmul.f32 %v520, -0.19509032
    %v542 = vmul.f32 %v521, -0.19509032
    %v543 = vmul.f32 %v522, -0.19509032
    %v544 = vmul.f32 %v523, -0.19509032
    %v545 = vmul.f32 %v524, -0.19509032
    %v546 = vmul.f32 %v525, -0.19509032
    %v547 = vmul.f32 %v526, -0.19509032
    %v548 = vadd.f32 %v492, %v541
    %v549 = vadd.f32 %v493, %v542
    %v550 = vadd.f32 %v494, %v543
    %v551 = vadd.f32 %v495, %v544
    %v552 = vadd.f32 %v496, %v545
    %v553 = vadd.f32 %v497, %v546
    %v554 = vadd.f32 %v498, %v547
    %v555 = vrcp.pop %v548
    %v556 = vrcp.pop %v549
    %v557 = vrcp.pop %v550
    %v558 = vrcp.pop %v551
    %v559 = vrcp.pop %v552
    %v560 = vrcp.pop %v553
    %v561 = vrcp.pop %v554
    %v562 = vmul.f32 %v534, %v555
    %v563 = vmul.f32 %v535, %v556
    %v564 = vmul.f32 %v536, %v557
    %v565 = vmul.f32 %v537, %v558
    %v566 = vmul.f32 %v538, %v559
    %v567 = vmul.f32 %v539, %v560
    %v568 = vmul.f32 %v540, %v561
    %v569 = vadd.f32 %v562, %v563
    %v570 = vadd.f32 %v569, %v564
    %v571 = vadd.f32 %v570, %v565
    %v572 = vadd.f32 %v571, %v566
    %v573 = vadd.f32 %v572, %v567
    %vm574 = vcmask 1041408
    %v575 = vsel %vm574, %v568, 0.0
    %v576 = vadd.f32 %v573, %v575
    %v577 = vrot.slane %v576, 4
    %v578 = vadd.f32 %v576, %v577
    %v579 = vrot.slane %v578, 2
    %v580 = vadd.f32 %v578, %v579
    %v581 = vrot.slane %v580, 1
    %v582 = vadd.f32 %v580, %v581
    %v583 = vrcp.pop 50.0
    %v584 = vmul.f32 %v582, %v583
    %v585 = vsub.f32 %v562, %v584
    %v586 = vsub.f32 %v563, %v584
    %v587 = vsub.f32 %v564, %v584
    %v588 = vsub.f32 %v565, %v584
    %v589 = vsub.f32 %v566, %v584
    %v590 = vsub.f32 %v567, %v584
    %v591 = vsub.f32 %v568, %v584
    %v592 = vmul.f32 %v585, %v585
    %v593 = vmul.f32 %v586, %v586
    %v594 = vmul.f32 %v587, %v587
    %v595 = vmul.f32 %v588, %v588
    %v596 = vmul.f32 %v589, %v589
    %v597 = vmul.f32 %v590, %v590
    %v598 = vmul.f32 %v591, %v591
    %v599 = vadd.f32 %v592, %v593
    %v600 = vadd.f32 %v599, %v594
    %v601 = vadd.f32 %v600, %v595
    %v602 = vadd.f32 %v601, %v596
    %v603 = vadd.f32 %v602, %v597
    %v604 = vsel %vm574, %v598, 0.0
    %v605 = vadd.f32 %v603, %v604
    %v606 = vrot.slane %v605, 4
    %v607 = vadd.f32 %v605, %v606
    %v608 = vrot.slane %v607, 2
    %v609 = vadd.f32 %v607, %v608
    %v610 = vrot.slane %v609, 1
    %v611 = vadd.f32 %v609, %v610
    %v612 = vmul.f32 %v611, %v583
    %v613 = vadd.f32 %v612, 1e-05
    %v614 = vrsqrt.pop %v613
    %v615 = vmul.f32 %v585, %v614
    %v616 = vmul.f32 %v586, %v614
    %v617 = vmul.f32 %v587, %v614
    %v618 = vmul.f32 %v588, %v614
    %v619 = vmul.f32 %v589, %v614
    %v620 = vmul.f32 %v590, %v614
    %v621 = vmul.f32 %v591, %v614
    %622 = vset.pattern.permute.xlu0 2
    %623 = vperm.xlu0 %622, %v16
    %v624 = vpop.permute.xlu0 %623
    %626 = vset.pattern.permute.xlu0 2
    %627 = vperm.xlu0 %626, %v17
    %v628 = vpop.permute.xlu0 %627
    %630 = vset.pattern.permute.xlu0 2
    %631 = vperm.xlu0 %630, %v18
    %v632 = vpop.permute.xlu0 %631
    %634 = vset.pattern.permute.xlu0 2
    %635 = vperm.xlu0 %634, %v19
    %v636 = vpop.permute.xlu0 %635
    %638 = vset.pattern.permute.xlu0 2
    %639 = vperm.xlu0 %638, %v20
    %v640 = vpop.permute.xlu0 %639
    %642 = vset.pattern.permute.xlu0 2
    %643 = vperm.xlu0 %642, %v21
    %v644 = vpop.permute.xlu0 %643
    %646 = vset.pattern.permute.xlu0 2
    %647 = vperm.xlu0 %646, %v22
    %v648 = vpop.permute.xlu0 %647
    %v650 = vmul.f32 %v615, %v624
    %v651 = vmul.f32 %v616, %v628
    %v652 = vmul.f32 %v617, %v632
    %v653 = vmul.f32 %v618, %v636
    %v654 = vmul.f32 %v619, %v640
    %v655 = vmul.f32 %v620, %v644
    %v656 = vmul.f32 %v621, %v648
    %657 = vset.pattern.permute.xlu0 3
    %658 = vperm.xlu0 %657, %v16
    %v659 = vpop.permute.xlu0 %658
    %661 = vset.pattern.permute.xlu0 3
    %662 = vperm.xlu0 %661, %v17
    %v663 = vpop.permute.xlu0 %662
    %665 = vset.pattern.permute.xlu0 3
    %666 = vperm.xlu0 %665, %v18
    %v667 = vpop.permute.xlu0 %666
    %669 = vset.pattern.permute.xlu0 3
    %670 = vperm.xlu0 %669, %v19
    %v671 = vpop.permute.xlu0 %670
    %673 = vset.pattern.permute.xlu0 3
    %674 = vperm.xlu0 %673, %v20
    %v675 = vpop.permute.xlu0 %674
    %677 = vset.pattern.permute.xlu0 3
    %678 = vperm.xlu0 %677, %v21
    %v679 = vpop.permute.xlu0 %678
    %681 = vset.pattern.permute.xlu0 3
    %682 = vperm.xlu0 %681, %v22
    %v683 = vpop.permute.xlu0 %682
    %v685 = vadd.f32 %v650, %v659
    %v686 = vadd.f32 %v651, %v663
    %v687 = vadd.f32 %v652, %v667
    %v688 = vadd.f32 %v653, %v671
    %v689 = vadd.f32 %v654, %v675
    %v690 = vadd.f32 %v655, %v679
    %v691 = vadd.f32 %v656, %v683
    %v692 = vld [vmem:[%s2] sm:$0xff]
    %v693 = vld [vmem:[%s2 + $0x8] sm:$0xff]
    %v694 = vld [vmem:[%s2 + $0x10] sm:$0xff]
    %v695 = vld [vmem:[%s2 + $0x18] sm:$0xff]
    %v696 = vld [vmem:[%s2 + $0x20] sm:$0xff]
    %v697 = vld [vmem:[%s2 + $0x28] sm:$0xff]
    %v698 = vld [vmem:[%s2 + $0x30] sm:$0x3]
    %699 = vset.pattern.permute.xlu0 4
    %700 = vperm.xlu0 %699, %v16
    %v701 = vpop.permute.xlu0 %700
    %703 = vset.pattern.permute.xlu0 4
    %704 = vperm.xlu0 %703, %v17
    %v705 = vpop.permute.xlu0 %704
    %707 = vset.pattern.permute.xlu0 4
    %708 = vperm.xlu0 %707, %v18
    %v709 = vpop.permute.xlu0 %708
    %711 = vset.pattern.permute.xlu0 4
    %712 = vperm.xlu0 %711, %v19
    %v713 = vpop.permute.xlu0 %712
    %715 = vset.pattern.permute.xlu0 4
    %716 = vperm.xlu0 %715, %v20
    %v717 = vpop.permute.xlu0 %716
    %719 = vset.pattern.permute.xlu0 4
    %720 = vperm.xlu0 %719, %v21
    %v721 = vpop.permute.xlu0 %720
    %723 = vset.pattern.permute.xlu0 4
    %724 = vperm.xlu0 %723, %v22
    %v725 = vpop.permute.xlu0 %724
    %vm727 = vcmask 408576
    %v729 = vsel %vm727, %v692, 0
    %v732 = vsel %vm727, %v693, 0
    %v735 = vsel %vm727, %v694, 0
    %v738 = vsel %vm727, %v695, 0
    %v741 = vsel %vm727, %v696, 0
    %v744 = vsel %vm727, %v697, 0
    %v747 = vsel %vm727, %v698, 0
    %v750 = vsel %vm574, %v691, 0
    %752 = vmatprep.subr.mxu0 0.0
    %753 = vmatpush1.msra.mxu0 %v685
    %754 = vmatprep.subr.mxu0 0.0
    %755 = vmatpush1.msra.mxu0 %v686
    %756 = vmatprep.subr.mxu0 0.0
    %757 = vmatpush1.msra.mxu0 %v687
    %758 = vmatprep.subr.mxu0 0.0
    %759 = vmatpush1.msra.mxu0 %v688
    %760 = vmatprep.subr.mxu0 0.0
    %761 = vmatpush1.msra.mxu0 %v689
    %762 = vmatprep.subr.mxu0 0.0
    %763 = vmatpush1.msra.mxu0 %v690
    %764 = vmatprep.subr.mxu0 0.0
    %765 = vmatpush1.msra.mxu0 %v750
    %766 = vmatprep.subr.mxu0 0.0
    %767 = vmatpush1.msra.mxu0 0.0
    %768 = vmatprep.subr.mxu0 0.0
    %769 = vmatpush1.msra.mxu0 0.0
    %770 = vmatprep.subr.mxu0 0.0
    %771 = vmatpush1.msra.mxu0 0.0
    %772 = vmatprep.subr.mxu0 0.0
    %773 = vmatpush1.msra.mxu0 0.0
    %774 = vmatprep.subr.mxu0 0.0
    %775 = vmatpush1.msra.mxu0 0.0
    %776 = vmatprep.subr.mxu0 0.0
    %777 = vmatpush1.msra.mxu0 0.0
    %778 = vmatprep.subr.mxu0 0.0
    %779 = vmatpush1.msra.mxu0 0.0
    %780 = vmatprep.subr.mxu0 0.0
    %781 = vmatpush1.msra.mxu0 0.0
    %782 = vmatprep.subr.mxu0 0.0
    %783 = vmatpush1.msra.mxu0 0.0
    %784 = vmatprep.subr.mxu0 0.0
    %785 = vmatpush1.msra.mxu0 0.0
    %786 = vmatprep.subr.mxu0 0.0
    %787 = vmatpush1.msra.mxu0 0.0
    %788 = vmatprep.subr.mxu0 0.0
    %789 = vmatpush1.msra.mxu0 0.0
    %790 = vmatprep.subr.mxu0 0.0
    %791 = vmatpush1.msra.mxu0 0.0
    %792 = vmatprep.subr.mxu0 0.0
    %793 = vmatpush1.msra.mxu0 0.0
    %794 = vmatprep.subr.mxu0 0.0
    %795 = vmatpush1.msra.mxu0 0.0
    %796 = vmatprep.subr.mxu0 0.0
    %797 = vmatpush1.msra.mxu0 0.0
    %798 = vmatprep.subr.mxu0 0.0
    %799 = vmatpush1.msra.mxu0 0.0
    %800 = vmatprep.subr.mxu0 0.0
    %801 = vmatpush1.msra.mxu0 0.0
    %802 = vmatprep.subr.mxu0 0.0
    %803 = vmatpush1.msra.mxu0 0.0
    %804 = vmatprep.subr.mxu0 0.0
    %805 = vmatpush1.msra.mxu0 0.0
    %806 = vmatprep.subr.mxu0 0.0
    %807 = vmatpush1.msra.mxu0 0.0
    %808 = vmatprep.subr.mxu0 0.0
    %809 = vmatpush1.msra.mxu0 0.0
    %810 = vmatprep.subr.mxu0 0.0
    %811 = vmatpush1.msra.mxu0 0.0
    %812 = vmatprep.subr.mxu0 0.0
    %813 = vmatpush1.msra.mxu0 0.0
    %814 = vmatprep.subr.mxu0 0.0
    %815 = vmatpush1.msra.mxu0 0.0
    %816 = vmatprep.mubr.f32.mxu0 0.0
    %817 = vmatmul.mubr.f32.gmra.mrb[0].mxu0 %v729
    %v818 = vpop.f32.mrb[0].mxu0
    %v819 = vadd.f32 %v701, %v818
    %v820 = vpop.f32.mrb[0].mxu0
    %821 = vmatprep.mubr.f32.mxu0 0.0
    %822 = vmatmul.mubr.f32.gmra.mrb[0].mxu0 %v732
    %v823 = vpop.f32.mrb[0].mxu0
    %v824 = vadd.f32 %v705, %v823
    %v825 = vpop.f32.mrb[0].mxu0
    %826 = vmatprep.mubr.f32.mxu0 0.0
    %827 = vmatmul.mubr.f32.gmra.mrb[0].mxu0 %v735
    %v828 = vpop.f32.mrb[0].mxu0
    %v829 = vadd.f32 %v709, %v828
    %v830 = vpop.f32.mrb[0].mxu0
    %831 = vmatprep.mubr.f32.mxu0 0.0
    %832 = vmatmul.mubr.f32.gmra.mrb[0].mxu0 %v738
    %v833 = vpop.f32.mrb[0].mxu0
    %v834 = vadd.f32 %v713, %v833
    %v835 = vpop.f32.mrb[0].mxu0
    %836 = vmatprep.mubr.f32.mxu0 0.0
    %837 = vmatmul.mubr.f32.gmra.mrb[0].mxu0 %v741
    %v838 = vpop.f32.mrb[0].mxu0
    %v839 = vadd.f32 %v717, %v838
    %v840 = vpop.f32.mrb[0].mxu0
    %841 = vmatprep.mubr.f32.mxu0 0.0
    %842 = vmatmul.mubr.f32.gmra.mrb[0].mxu0 %v744
    %v843 = vpop.f32.mrb[0].mxu0
    %v844 = vadd.f32 %v721, %v843
    %v845 = vpop.f32.mrb[0].mxu0
    %846 = vmatprep.mubr.f32.mxu0 0.0
    %847 = vmatmul.mubr.f32.gmra.mrb[0].mxu0 %v747
    %v848 = vpop.f32.mrb[0].mxu0
    %v849 = vadd.f32 %v725, %v848
    %v850 = vpop.f32.mrb[0].mxu0
    %851 = vdwg.mxu0
    %v852 = vsub.f32 %v819, 2.9423559
    %v853 = vsub.f32 %v824, 2.9423559
    %v854 = vsub.f32 %v829, 2.9423559
    %v855 = vsub.f32 %v834, 2.9423559
    %v856 = vsub.f32 %v839, 2.9423559
    %v857 = vsub.f32 %v844, 2.9423559
    %v858 = vsub.f32 %v849, 2.9423559
    %vm859 = vcmp.eq.f32.partialorder %v852, 0.0
    %vm860 = vcmp.eq.f32.partialorder %v853, 0.0
    %vm861 = vcmp.eq.f32.partialorder %v854, 0.0
    %vm862 = vcmp.eq.f32.partialorder %v855, 0.0
    %vm863 = vcmp.eq.f32.partialorder %v856, 0.0
    %vm864 = vcmp.eq.f32.partialorder %v857, 0.0
    %vm865 = vcmp.eq.f32.partialorder %v858, 0.0
    %v866 = vsel %vm859, 1e-12, %v852
    %v867 = vsel %vm860, 1e-12, %v853
    %v868 = vsel %vm861, 1e-12, %v854
    %v869 = vsel %vm862, 1e-12, %v855
    %v870 = vsel %vm863, 1e-12, %v856
    %v871 = vsel %vm864, 1e-12, %v857
    %v872 = vsel %vm865, 1e-12, %v858
    %v873 = vrcp.pop %v866
    %v874 = vrcp.pop %v867
    %v875 = vrcp.pop %v868
    %v876 = vrcp.pop %v869
    %v877 = vrcp.pop %v870
    %v878 = vrcp.pop %v871
    %v879 = vrcp.pop %v872
    %v880 = vmul.f32 %v873, 0.194008
    %v881 = vmul.f32 %v874, 0.194008
    %v882 = vmul.f32 %v875, 0.194008
    %v883 = vmul.f32 %v876, 0.194008
    %v884 = vmul.f32 %v877, 0.194008
    %v885 = vmul.f32 %v878, 0.194008
    %v886 = vmul.f32 %v879, 0.194008
    %v887 = vadd.f32 %v880, 0.0
    %v888 = vadd.f32 %v881, 0.0
    %v889 = vadd.f32 %v882, 0.0
    %v890 = vadd.f32 %v883, 0.0
    %v891 = vadd.f32 %v884, 0.0
    %v892 = vadd.f32 %v885, 0.0
    %v893 = vadd.f32 %v886, 0.0
    %v894 = vmul.f32 %v873, 0.19509032
    %v895 = vmul.f32 %v874, 0.19509032
    %v896 = vmul.f32 %v875, 0.19509032
    %v897 = vmul.f32 %v876, 0.19509032
    %v898 = vmul.f32 %v877, 0.19509032
    %v899 = vmul.f32 %v878, 0.19509032
    %v900 = vmul.f32 %v879, 0.19509032
    %v901 = vadd.f32 %v894, 0.0
    %v902 = vadd.f32 %v895, 0.0
    %v903 = vadd.f32 %v896, 0.0
    %v904 = vadd.f32 %v897, 0.0
    %v905 = vadd.f32 %v898, 0.0
    %v906 = vadd.f32 %v899, 0.0
    %v907 = vadd.f32 %v900, 0.0
    %v908 = vsub.f32 %v819, 2.4944088
    %v909 = vsub.f32 %v824, 2.4944088
    %v910 = vsub.f32 %v829, 2.4944088
    %v911 = vsub.f32 %v834, 2.4944088
    %v912 = vsub.f32 %v839, 2.4944088
    %v913 = vsub.f32 %v844, 2.4944088
    %v914 = vsub.f32 %v849, 2.4944088
    %vm915 = vcmp.eq.f32.partialorder %v908, 0.0
    %vm916 = vcmp.eq.f32.partialorder %v909, 0.0
    %vm917 = vcmp.eq.f32.partialorder %v910, 0.0
    %vm918 = vcmp.eq.f32.partialorder %v911, 0.0
    %vm919 = vcmp.eq.f32.partialorder %v912, 0.0
    %vm920 = vcmp.eq.f32.partialorder %v913, 0.0
    %vm921 = vcmp.eq.f32.partialorder %v914, 0.0
    %v922 = vsel %vm915, 1e-12, %v908
    %v923 = vsel %vm916, 1e-12, %v909
    %v924 = vsel %vm917, 1e-12, %v910
    %v925 = vsel %vm918, 1e-12, %v911
    %v926 = vsel %vm919, 1e-12, %v912
    %v927 = vsel %vm920, 1e-12, %v913
    %v928 = vsel %vm921, 1e-12, %v914
    %v929 = vrcp.pop %v922
    %v930 = vrcp.pop %v923
    %v931 = vrcp.pop %v924
    %v932 = vrcp.pop %v925
    %v933 = vrcp.pop %v926
    %v934 = vrcp.pop %v927
    %v935 = vrcp.pop %v928
    %v936 = vmul.f32 %v929, -0.54805046
    %v937 = vmul.f32 %v930, -0.54805046
    %v938 = vmul.f32 %v931, -0.54805046
    %v939 = vmul.f32 %v932, -0.54805046
    %v940 = vmul.f32 %v933, -0.54805046
    %v941 = vmul.f32 %v934, -0.54805046
    %v942 = vmul.f32 %v935, -0.54805046
    %v943 = vadd.f32 %v887, %v936
    %v944 = vadd.f32 %v888, %v937
    %v945 = vadd.f32 %v889, %v938
    %v946 = vadd.f32 %v890, %v939
    %v947 = vadd.f32 %v891, %v940
    %v948 = vadd.f32 %v892, %v941
    %v949 = vadd.f32 %v893, %v942
    %v950 = vmul.f32 %v929, -0.55557024
    %v951 = vmul.f32 %v930, -0.55557024
    %v952 = vmul.f32 %v931, -0.55557024
    %v953 = vmul.f32 %v932, -0.55557024
    %v954 = vmul.f32 %v933, -0.55557024
    %v955 = vmul.f32 %v934, -0.55557024
    %v956 = vmul.f32 %v935, -0.55557024
    %v957 = vadd.f32 %v901, %v950
    %v958 = vadd.f32 %v902, %v951
    %v959 = vadd.f32 %v903, %v952
    %v960 = vadd.f32 %v904, %v953
    %v961 = vadd.f32 %v905, %v954
    %v962 = vadd.f32 %v906, %v955
    %v963 = vadd.f32 %v907, %v956
    %v964 = vsub.f32 %v819, 1.6667107
    %v965 = vsub.f32 %v824, 1.6667107
    %v966 = vsub.f32 %v829, 1.6667107
    %v967 = vsub.f32 %v834, 1.6667107
    %v968 = vsub.f32 %v839, 1.6667107
    %v969 = vsub.f32 %v844, 1.6667107
    %v970 = vsub.f32 %v849, 1.6667107
    %vm971 = vcmp.eq.f32.partialorder %v964, 0.0
    %vm972 = vcmp.eq.f32.partialorder %v965, 0.0
    %vm973 = vcmp.eq.f32.partialorder %v966, 0.0
    %vm974 = vcmp.eq.f32.partialorder %v967, 0.0
    %vm975 = vcmp.eq.f32.partialorder %v968, 0.0
    %vm976 = vcmp.eq.f32.partialorder %v969, 0.0
    %vm977 = vcmp.eq.f32.partialorder %v970, 0.0
    %v978 = vsel %vm971, 1e-12, %v964
    %v979 = vsel %vm972, 1e-12, %v965
    %v980 = vsel %vm973, 1e-12, %v966
    %v981 = vsel %vm974, 1e-12, %v967
    %v982 = vsel %vm975, 1e-12, %v968
    %v983 = vsel %vm976, 1e-12, %v969
    %v984 = vsel %vm977, 1e-12, %v970
    %v985 = vrcp.pop %v978
    %v986 = vrcp.pop %v979
    %v987 = vrcp.pop %v980
    %v988 = vrcp.pop %v981
    %v989 = vrcp.pop %v982
    %v990 = vrcp.pop %v983
    %v991 = vrcp.pop %v984
    %v992 = vmul.f32 %v985, 0.7741942
    %v993 = vmul.f32 %v986, 0.7741942
    %v994 = vmul.f32 %v987, 0.7741942
    %v995 = vmul.f32 %v988, 0.7741942
    %v996 = vmul.f32 %v989, 0.7741942
    %v997 = vmul.f32 %v990, 0.7741942
    %v998 = vmul.f32 %v991, 0.7741942
    %v999 = vadd.f32 %v943, %v992
    %v1000 = vadd.f32 %v944, %v993
    %v1001 = vadd.f32 %v945, %v994
    %v1002 = vadd.f32 %v946, %v995
    %v1003 = vadd.f32 %v947, %v996
    %v1004 = vadd.f32 %v948, %v997
    %v1005 = vadd.f32 %v949, %v998
    %v1006 = vmul.f32 %v985, 0.8314696
    %v1007 = vmul.f32 %v986, 0.8314696
    %v1008 = vmul.f32 %v987, 0.8314696
    %v1009 = vmul.f32 %v988, 0.8314696
    %v1010 = vmul.f32 %v989, 0.8314696
    %v1011 = vmul.f32 %v990, 0.8314696
    %v1012 = vmul.f32 %v991, 0.8314696
    %v1013 = vadd.f32 %v957, %v1006
    %v1014 = vadd.f32 %v958, %v1007
    %v1015 = vadd.f32 %v959, %v1008
    %v1016 = vadd.f32 %v960, %v1009
    %v1017 = vadd.f32 %v961, %v1010
    %v1018 = vadd.f32 %v962, %v1011
    %v1019 = vadd.f32 %v963, %v1012
    %v1020 = vsub.f32 %v819, 0.58527094
    %v1021 = vsub.f32 %v824, 0.58527094
    %v1022 = vsub.f32 %v829, 0.58527094
    %v1023 = vsub.f32 %v834, 0.58527094
    %v1024 = vsub.f32 %v839, 0.58527094
    %v1025 = vsub.f32 %v844, 0.58527094
    %v1026 = vsub.f32 %v849, 0.58527094
    %vm1027 = vcmp.eq.f32.partialorder %v1020, 0.0
    %vm1028 = vcmp.eq.f32.partialorder %v1021, 0.0
    %vm1029 = vcmp.eq.f32.partialorder %v1022, 0.0
    %vm1030 = vcmp.eq.f32.partialorder %v1023, 0.0
    %vm1031 = vcmp.eq.f32.partialorder %v1024, 0.0
    %vm1032 = vcmp.eq.f32.partialorder %v1025, 0.0
    %vm1033 = vcmp.eq.f32.partialorder %v1026, 0.0
    %v1034 = vsel %vm1027, 1e-12, %v1020
    %v1035 = vsel %vm1028, 1e-12, %v1021
    %v1036 = vsel %vm1029, 1e-12, %v1022
    %v1037 = vsel %vm1030, 1e-12, %v1023
    %v1038 = vsel %vm1031, 1e-12, %v1024
    %v1039 = vsel %vm1032, 1e-12, %v1025
    %v1040 = vsel %vm1033, 1e-12, %v1026
    %v1041 = vrcp.pop %v1034
    %v1042 = vrcp.pop %v1035
    %v1043 = vrcp.pop %v1036
    %v1044 = vrcp.pop %v1037
    %v1045 = vrcp.pop %v1038
    %v1046 = vrcp.pop %v1039
    %v1047 = vrcp.pop %v1040
    %v1048 = vmul.f32 %v1041, -0.51636964
    %v1049 = vmul.f32 %v1042, -0.51636964
    %v1050 = vmul.f32 %v1043, -0.51636964
    %v1051 = vmul.f32 %v1044, -0.51636964
    %v1052 = vmul.f32 %v1045, -0.51636964
    %v1053 = vmul.f32 %v1046, -0.51636964
    %v1054 = vmul.f32 %v1047, -0.51636964
    %v1055 = vadd.f32 %v999, %v1048
    %v1056 = vadd.f32 %v1000, %v1049
    %v1057 = vadd.f32 %v1001, %v1050
    %v1058 = vadd.f32 %v1002, %v1051
    %v1059 = vadd.f32 %v1003, %v1052
    %v1060 = vadd.f32 %v1004, %v1053
    %v1061 = vadd.f32 %v1005, %v1054
    %v1062 = vmul.f32 %v1041, -0.98078525
    %v1063 = vmul.f32 %v1042, -0.98078525
    %v1064 = vmul.f32 %v1043, -0.98078525
    %v1065 = vmul.f32 %v1044, -0.98078525
    %v1066 = vmul.f32 %v1045, -0.98078525
    %v1067 = vmul.f32 %v1046, -0.98078525
    %v1068 = vmul.f32 %v1047, -0.98078525
    %v1069 = vadd.f32 %v1013, %v1062
    %v1070 = vadd.f32 %v1014, %v1063
    %v1071 = vadd.f32 %v1015, %v1064
    %v1072 = vadd.f32 %v1016, %v1065
    %v1073 = vadd.f32 %v1017, %v1066
    %v1074 = vadd.f32 %v1018, %v1067
    %v1075 = vadd.f32 %v1019, %v1068
    %v1076 = vsub.f32 %v819, -0.58527094
    %v1077 = vsub.f32 %v824, -0.58527094
    %v1078 = vsub.f32 %v829, -0.58527094
    %v1079 = vsub.f32 %v834, -0.58527094
    %v1080 = vsub.f32 %v839, -0.58527094
    %v1081 = vsub.f32 %v844, -0.58527094
    %v1082 = vsub.f32 %v849, -0.58527094
    %vm1083 = vcmp.eq.f32.partialorder %v1076, 0.0
    %vm1084 = vcmp.eq.f32.partialorder %v1077, 0.0
    %vm1085 = vcmp.eq.f32.partialorder %v1078, 0.0
    %vm1086 = vcmp.eq.f32.partialorder %v1079, 0.0
    %vm1087 = vcmp.eq.f32.partialorder %v1080, 0.0
    %vm1088 = vcmp.eq.f32.partialorder %v1081, 0.0
    %vm1089 = vcmp.eq.f32.partialorder %v1082, 0.0
    %v1090 = vsel %vm1083, 1e-12, %v1076
    %v1091 = vsel %vm1084, 1e-12, %v1077
    %v1092 = vsel %vm1085, 1e-12, %v1078
    %v1093 = vsel %vm1086, 1e-12, %v1079
    %v1094 = vsel %vm1087, 1e-12, %v1080
    %v1095 = vsel %vm1088, 1e-12, %v1081
    %v1096 = vsel %vm1089, 1e-12, %v1082
    %v1097 = vrcp.pop %v1090
    %v1098 = vrcp.pop %v1091
    %v1099 = vrcp.pop %v1092
    %v1100 = vrcp.pop %v1093
    %v1101 = vrcp.pop %v1094
    %v1102 = vrcp.pop %v1095
    %v1103 = vrcp.pop %v1096
    %v1104 = vmul.f32 %v1097, -0.51636964
    %v1105 = vmul.f32 %v1098, -0.51636964
    %v1106 = vmul.f32 %v1099, -0.51636964
    %v1107 = vmul.f32 %v1100, -0.51636964
    %v1108 = vmul.f32 %v1101, -0.51636964
    %v1109 = vmul.f32 %v1102, -0.51636964
    %v1110 = vmul.f32 %v1103, -0.51636964
    %v1111 = vadd.f32 %v1055, %v1104
    %v1112 = vadd.f32 %v1056, %v1105
    %v1113 = vadd.f32 %v1057, %v1106
    %v1114 = vadd.f32 %v1058, %v1107
    %v1115 = vadd.f32 %v1059, %v1108
    %v1116 = vadd.f32 %v1060, %v1109
    %v1117 = vadd.f32 %v1061, %v1110
    %v1118 = vmul.f32 %v1097, 0.98078525
    %v1119 = vmul.f32 %v1098, 0.98078525
    %v1120 = vmul.f32 %v1099, 0.98078525
    %v1121 = vmul.f32 %v1100, 0.98078525
    %v1122 = vmul.f32 %v1101, 0.98078525
    %v1123 = vmul.f32 %v1102, 0.98078525
    %v1124 = vmul.f32 %v1103, 0.98078525
    %v1125 = vadd.f32 %v1069, %v1118
    %v1126 = vadd.f32 %v1070, %v1119
    %v1127 = vadd.f32 %v1071, %v1120
    %v1128 = vadd.f32 %v1072, %v1121
    %v1129 = vadd.f32 %v1073, %v1122
    %v1130 = vadd.f32 %v1074, %v1123
    %v1131 = vadd.f32 %v1075, %v1124
    %v1132 = vsub.f32 %v819, -1.6667107
    %v1133 = vsub.f32 %v824, -1.6667107
    %v1134 = vsub.f32 %v829, -1.6667107
    %v1135 = vsub.f32 %v834, -1.6667107
    %v1136 = vsub.f32 %v839, -1.6667107
    %v1137 = vsub.f32 %v844, -1.6667107
    %v1138 = vsub.f32 %v849, -1.6667107
    %vm1139 = vcmp.eq.f32.partialorder %v1132, 0.0
    %vm1140 = vcmp.eq.f32.partialorder %v1133, 0.0
    %vm1141 = vcmp.eq.f32.partialorder %v1134, 0.0
    %vm1142 = vcmp.eq.f32.partialorder %v1135, 0.0
    %vm1143 = vcmp.eq.f32.partialorder %v1136, 0.0
    %vm1144 = vcmp.eq.f32.partialorder %v1137, 0.0
    %vm1145 = vcmp.eq.f32.partialorder %v1138, 0.0
    %v1146 = vsel %vm1139, 1e-12, %v1132
    %v1147 = vsel %vm1140, 1e-12, %v1133
    %v1148 = vsel %vm1141, 1e-12, %v1134
    %v1149 = vsel %vm1142, 1e-12, %v1135
    %v1150 = vsel %vm1143, 1e-12, %v1136
    %v1151 = vsel %vm1144, 1e-12, %v1137
    %v1152 = vsel %vm1145, 1e-12, %v1138
    %v1153 = vrcp.pop %v1146
    %v1154 = vrcp.pop %v1147
    %v1155 = vrcp.pop %v1148
    %v1156 = vrcp.pop %v1149
    %v1157 = vrcp.pop %v1150
    %v1158 = vrcp.pop %v1151
    %v1159 = vrcp.pop %v1152
    %v1160 = vmul.f32 %v1153, 0.7741942
    %v1161 = vmul.f32 %v1154, 0.7741942
    %v1162 = vmul.f32 %v1155, 0.7741942
    %v1163 = vmul.f32 %v1156, 0.7741942
    %v1164 = vmul.f32 %v1157, 0.7741942
    %v1165 = vmul.f32 %v1158, 0.7741942
    %v1166 = vmul.f32 %v1159, 0.7741942
    %v1167 = vadd.f32 %v1111, %v1160
    %v1168 = vadd.f32 %v1112, %v1161
    %v1169 = vadd.f32 %v1113, %v1162
    %v1170 = vadd.f32 %v1114, %v1163
    %v1171 = vadd.f32 %v1115, %v1164
    %v1172 = vadd.f32 %v1116, %v1165
    %v1173 = vadd.f32 %v1117, %v1166
    %v1174 = vmul.f32 %v1153, -0.8314696
    %v1175 = vmul.f32 %v1154, -0.8314696
    %v1176 = vmul.f32 %v1155, -0.8314696
    %v1177 = vmul.f32 %v1156, -0.8314696
    %v1178 = vmul.f32 %v1157, -0.8314696
    %v1179 = vmul.f32 %v1158, -0.8314696
    %v1180 = vmul.f32 %v1159, -0.8314696
    %v1181 = vadd.f32 %v1125, %v1174
    %v1182 = vadd.f32 %v1126, %v1175
    %v1183 = vadd.f32 %v1127, %v1176
    %v1184 = vadd.f32 %v1128, %v1177
    %v1185 = vadd.f32 %v1129, %v1178
    %v1186 = vadd.f32 %v1130, %v1179
    %v1187 = vadd.f32 %v1131, %v1180
    %v1188 = vsub.f32 %v819, -2.4944088
    %v1189 = vsub.f32 %v824, -2.4944088
    %v1190 = vsub.f32 %v829, -2.4944088
    %v1191 = vsub.f32 %v834, -2.4944088
    %v1192 = vsub.f32 %v839, -2.4944088
    %v1193 = vsub.f32 %v844, -2.4944088
    %v1194 = vsub.f32 %v849, -2.4944088
    %vm1195 = vcmp.eq.f32.partialorder %v1188, 0.0
    %vm1196 = vcmp.eq.f32.partialorder %v1189, 0.0
    %vm1197 = vcmp.eq.f32.partialorder %v1190, 0.0
    %vm1198 = vcmp.eq.f32.partialorder %v1191, 0.0
    %vm1199 = vcmp.eq.f32.partialorder %v1192, 0.0
    %vm1200 = vcmp.eq.f32.partialorder %v1193, 0.0
    %vm1201 = vcmp.eq.f32.partialorder %v1194, 0.0
    %v1202 = vsel %vm1195, 1e-12, %v1188
    %v1203 = vsel %vm1196, 1e-12, %v1189
    %v1204 = vsel %vm1197, 1e-12, %v1190
    %v1205 = vsel %vm1198, 1e-12, %v1191
    %v1206 = vsel %vm1199, 1e-12, %v1192
    %v1207 = vsel %vm1200, 1e-12, %v1193
    %v1208 = vsel %vm1201, 1e-12, %v1194
    %v1209 = vrcp.pop %v1202
    %v1210 = vrcp.pop %v1203
    %v1211 = vrcp.pop %v1204
    %v1212 = vrcp.pop %v1205
    %v1213 = vrcp.pop %v1206
    %v1214 = vrcp.pop %v1207
    %v1215 = vrcp.pop %v1208
    %v1216 = vmul.f32 %v1209, -0.54805046
    %v1217 = vmul.f32 %v1210, -0.54805046
    %v1218 = vmul.f32 %v1211, -0.54805046
    %v1219 = vmul.f32 %v1212, -0.54805046
    %v1220 = vmul.f32 %v1213, -0.54805046
    %v1221 = vmul.f32 %v1214, -0.54805046
    %v1222 = vmul.f32 %v1215, -0.54805046
    %v1223 = vadd.f32 %v1167, %v1216
    %v1224 = vadd.f32 %v1168, %v1217
    %v1225 = vadd.f32 %v1169, %v1218
    %v1226 = vadd.f32 %v1170, %v1219
    %v1227 = vadd.f32 %v1171, %v1220
    %v1228 = vadd.f32 %v1172, %v1221
    %v1229 = vadd.f32 %v1173, %v1222
    %v1230 = vmul.f32 %v1209, 0.55557024
    %v1231 = vmul.f32 %v1210, 0.55557024
    %v1232 = vmul.f32 %v1211, 0.55557024
    %v1233 = vmul.f32 %v1212, 0.55557024
    %v1234 = vmul.f32 %v1213, 0.55557024
    %v1235 = vmul.f32 %v1214, 0.55557024
    %v1236 = vmul.f32 %v1215, 0.55557024
    %v1237 = vadd.f32 %v1181, %v1230
    %v1238 = vadd.f32 %v1182, %v1231
    %v1239 = vadd.f32 %v1183, %v1232
    %v1240 = vadd.f32 %v1184, %v1233
    %v1241 = vadd.f32 %v1185, %v1234
    %v1242 = vadd.f32 %v1186, %v1235
    %v1243 = vadd.f32 %v1187, %v1236
    %v1244 = vsub.f32 %v819, -2.9423559
    %v1245 = vsub.f32 %v824, -2.9423559
    %v1246 = vsub.f32 %v829, -2.9423559
    %v1247 = vsub.f32 %v834, -2.9423559
    %v1248 = vsub.f32 %v839, -2.9423559
    %v1249 = vsub.f32 %v844, -2.9423559
    %v1250 = vsub.f32 %v849, -2.9423559
    %vm1251 = vcmp.eq.f32.partialorder %v1244, 0.0
    %vm1252 = vcmp.eq.f32.partialorder %v1245, 0.0
    %vm1253 = vcmp.eq.f32.partialorder %v1246, 0.0
    %vm1254 = vcmp.eq.f32.partialorder %v1247, 0.0
    %vm1255 = vcmp.eq.f32.partialorder %v1248, 0.0
    %vm1256 = vcmp.eq.f32.partialorder %v1249, 0.0
    %vm1257 = vcmp.eq.f32.partialorder %v1250, 0.0
    %v1258 = vsel %vm1251, 1e-12, %v1244
    %v1259 = vsel %vm1252, 1e-12, %v1245
    %v1260 = vsel %vm1253, 1e-12, %v1246
    %v1261 = vsel %vm1254, 1e-12, %v1247
    %v1262 = vsel %vm1255, 1e-12, %v1248
    %v1263 = vsel %vm1256, 1e-12, %v1249
    %v1264 = vsel %vm1257, 1e-12, %v1250
    %v1265 = vrcp.pop %v1258
    %v1266 = vrcp.pop %v1259
    %v1267 = vrcp.pop %v1260
    %v1268 = vrcp.pop %v1261
    %v1269 = vrcp.pop %v1262
    %v1270 = vrcp.pop %v1263
    %v1271 = vrcp.pop %v1264
    %v1272 = vmul.f32 %v1265, 0.194008
    %v1273 = vmul.f32 %v1266, 0.194008
    %v1274 = vmul.f32 %v1267, 0.194008
    %v1275 = vmul.f32 %v1268, 0.194008
    %v1276 = vmul.f32 %v1269, 0.194008
    %v1277 = vmul.f32 %v1270, 0.194008
    %v1278 = vmul.f32 %v1271, 0.194008
    %v1279 = vadd.f32 %v1223, %v1272
    %v1280 = vadd.f32 %v1224, %v1273
    %v1281 = vadd.f32 %v1225, %v1274
    %v1282 = vadd.f32 %v1226, %v1275
    %v1283 = vadd.f32 %v1227, %v1276
    %v1284 = vadd.f32 %v1228, %v1277
    %v1285 = vadd.f32 %v1229, %v1278
    %v1286 = vmul.f32 %v1265, -0.19509032
    %v1287 = vmul.f32 %v1266, -0.19509032
    %v1288 = vmul.f32 %v1267, -0.19509032
    %v1289 = vmul.f32 %v1268, -0.19509032
    %v1290 = vmul.f32 %v1269, -0.19509032
    %v1291 = vmul.f32 %v1270, -0.19509032
    %v1292 = vmul.f32 %v1271, -0.19509032
    %v1293 = vadd.f32 %v1237, %v1286
    %v1294 = vadd.f32 %v1238, %v1287
    %v1295 = vadd.f32 %v1239, %v1288
    %v1296 = vadd.f32 %v1240, %v1289
    %v1297 = vadd.f32 %v1241, %v1290
    %v1298 = vadd.f32 %v1242, %v1291
    %v1299 = vadd.f32 %v1243, %v1292
    %v1300 = vrcp.pop %v1293
    %v1301 = vrcp.pop %v1294
    %v1302 = vrcp.pop %v1295
    %v1303 = vrcp.pop %v1296
    %v1304 = vrcp.pop %v1297
    %v1305 = vrcp.pop %v1298
    %v1306 = vrcp.pop %v1299
    %v1307 = vmul.f32 %v1279, %v1300
    %v1308 = vmul.f32 %v1280, %v1301
    %v1309 = vmul.f32 %v1281, %v1302
    %v1310 = vmul.f32 %v1282, %v1303
    %v1311 = vmul.f32 %v1283, %v1304
    %v1312 = vmul.f32 %v1284, %v1305
    %v1313 = vmul.f32 %v1285, %v1306
    %v1314 = vadd.f32 %v1307, %v1308
    %v1315 = vadd.f32 %v1314, %v1309
    %v1316 = vadd.f32 %v1315, %v1310
    %v1317 = vadd.f32 %v1316, %v1311
    %v1318 = vadd.f32 %v1317, %v1312
    %v1319 = vsel %vm574, %v1313, 0.0
    %v1320 = vadd.f32 %v1318, %v1319
    %v1321 = vrot.slane %v1320, 4
    %v1322 = vadd.f32 %v1320, %v1321
    %v1323 = vrot.slane %v1322, 2
    %v1324 = vadd.f32 %v1322, %v1323
    %v1325 = vrot.slane %v1324, 1
    %v1326 = vadd.f32 %v1324, %v1325
    %v1327 = vmul.f32 %v1326, %v583
    %v1328 = vsub.f32 %v1307, %v1327
    %v1329 = vsub.f32 %v1308, %v1327
    %v1330 = vsub.f32 %v1309, %v1327
    %v1331 = vsub.f32 %v1310, %v1327
    %v1332 = vsub.f32 %v1311, %v1327
    %v1333 = vsub.f32 %v1312, %v1327
    %v1334 = vsub.f32 %v1313, %v1327
    %v1335 = vmul.f32 %v1328, %v1328
    %v1336 = vmul.f32 %v1329, %v1329
    %v1337 = vmul.f32 %v1330, %v1330
    %v1338 = vmul.f32 %v1331, %v1331
    %v1339 = vmul.f32 %v1332, %v1332
    %v1340 = vmul.f32 %v1333, %v1333
    %v1341 = vmul.f32 %v1334, %v1334
    %v1342 = vadd.f32 %v1335, %v1336
    %v1343 = vadd.f32 %v1342, %v1337
    %v1344 = vadd.f32 %v1343, %v1338
    %v1345 = vadd.f32 %v1344, %v1339
    %v1346 = vadd.f32 %v1345, %v1340
    %v1347 = vsel %vm574, %v1341, 0.0
    %v1348 = vadd.f32 %v1346, %v1347
    %v1349 = vrot.slane %v1348, 4
    %v1350 = vadd.f32 %v1348, %v1349
    %v1351 = vrot.slane %v1350, 2
    %v1352 = vadd.f32 %v1350, %v1351
    %v1353 = vrot.slane %v1352, 1
    %v1354 = vadd.f32 %v1352, %v1353
    %v1355 = vmul.f32 %v1354, %v583
    %v1356 = vadd.f32 %v1355, 1e-05
    %v1357 = vrsqrt.pop %v1356
    %v1358 = vmul.f32 %v1328, %v1357
    %v1359 = vmul.f32 %v1329, %v1357
    %v1360 = vmul.f32 %v1330, %v1357
    %v1361 = vmul.f32 %v1331, %v1357
    %v1362 = vmul.f32 %v1332, %v1357
    %v1363 = vmul.f32 %v1333, %v1357
    %v1364 = vmul.f32 %v1334, %v1357
    %1365 = vset.pattern.permute.xlu0 5
    %1366 = vperm.xlu0 %1365, %v16
    %v1367 = vpop.permute.xlu0 %1366
    %1369 = vset.pattern.permute.xlu0 5
    %1370 = vperm.xlu0 %1369, %v17
    %v1371 = vpop.permute.xlu0 %1370
    %1373 = vset.pattern.permute.xlu0 5
    %1374 = vperm.xlu0 %1373, %v18
    %v1375 = vpop.permute.xlu0 %1374
    %1377 = vset.pattern.permute.xlu0 5
    %1378 = vperm.xlu0 %1377, %v19
    %v1379 = vpop.permute.xlu0 %1378
    %1381 = vset.pattern.permute.xlu0 5
    %1382 = vperm.xlu0 %1381, %v20
    %v1383 = vpop.permute.xlu0 %1382
    %1385 = vset.pattern.permute.xlu0 5
    %1386 = vperm.xlu0 %1385, %v21
    %v1387 = vpop.permute.xlu0 %1386
    %1389 = vset.pattern.permute.xlu0 5
    %1390 = vperm.xlu0 %1389, %v22
    %v1391 = vpop.permute.xlu0 %1390
    %v1393 = vmul.f32 %v1358, %v1367
    %v1394 = vmul.f32 %v1359, %v1371
    %v1395 = vmul.f32 %v1360, %v1375
    %v1396 = vmul.f32 %v1361, %v1379
    %v1397 = vmul.f32 %v1362, %v1383
    %v1398 = vmul.f32 %v1363, %v1387
    %v1399 = vmul.f32 %v1364, %v1391
    %1400 = vset.pattern.permute.xlu0 6
    %1401 = vperm.xlu0 %1400, %v16
    %v1402 = vpop.permute.xlu0 %1401
    %1404 = vset.pattern.permute.xlu0 6
    %1405 = vperm.xlu0 %1404, %v17
    %v1406 = vpop.permute.xlu0 %1405
    %1408 = vset.pattern.permute.xlu0 6
    %1409 = vperm.xlu0 %1408, %v18
    %v1410 = vpop.permute.xlu0 %1409
    %1412 = vset.pattern.permute.xlu0 6
    %1413 = vperm.xlu0 %1412, %v19
    %v1414 = vpop.permute.xlu0 %1413
    %1416 = vset.pattern.permute.xlu0 6
    %1417 = vperm.xlu0 %1416, %v20
    %v1418 = vpop.permute.xlu0 %1417
    %1420 = vset.pattern.permute.xlu0 6
    %1421 = vperm.xlu0 %1420, %v21
    %v1422 = vpop.permute.xlu0 %1421
    %1424 = vset.pattern.permute.xlu0 6
    %1425 = vperm.xlu0 %1424, %v22
    %v1426 = vpop.permute.xlu0 %1425
    %v1428 = vadd.f32 %v1393, %v1402
    %v1429 = vadd.f32 %v1394, %v1406
    %v1430 = vadd.f32 %v1395, %v1410
    %v1431 = vadd.f32 %v1396, %v1414
    %v1432 = vadd.f32 %v1397, %v1418
    %v1433 = vadd.f32 %v1398, %v1422
    %v1434 = vadd.f32 %v1399, %v1426
    %1435 = vset.pattern.permute.xlu0 7
    %1436 = vperm.xlu0 %1435, %v16
    %v1437 = vpop.permute.xlu0 %1436
    %1439 = vset.pattern.permute.xlu0 7
    %1440 = vperm.xlu0 %1439, %v17
    %v1441 = vpop.permute.xlu0 %1440
    %1443 = vset.pattern.permute.xlu0 7
    %1444 = vperm.xlu0 %1443, %v18
    %v1445 = vpop.permute.xlu0 %1444
    %1447 = vset.pattern.permute.xlu0 7
    %1448 = vperm.xlu0 %1447, %v19
    %v1449 = vpop.permute.xlu0 %1448
    %1451 = vset.pattern.permute.xlu0 7
    %1452 = vperm.xlu0 %1451, %v20
    %v1453 = vpop.permute.xlu0 %1452
    %1455 = vset.pattern.permute.xlu0 7
    %1456 = vperm.xlu0 %1455, %v21
    %v1457 = vpop.permute.xlu0 %1456
    %1459 = vset.pattern.permute.xlu0 7
    %1460 = vperm.xlu0 %1459, %v22
    %v1461 = vpop.permute.xlu0 %1460
    %v1463 = vmul.f32 %v1428, %v1437
    %v1464 = vmul.f32 %v1429, %v1441
    %v1465 = vmul.f32 %v1430, %v1445
    %v1466 = vmul.f32 %v1431, %v1449
    %v1467 = vmul.f32 %v1432, %v1453
    %v1468 = vmul.f32 %v1433, %v1457
    %v1469 = vmul.f32 %v1434, %v1461
    %v1470 = vadd.f32 %v1463, %v1464
    %v1471 = vadd.f32 %v1470, %v1465
    %v1472 = vadd.f32 %v1471, %v1466
    %v1473 = vadd.f32 %v1472, %v1467
    %v1474 = vadd.f32 %v1473, %v1468
    %v1475 = vsel %vm574, %v1469, 0.0
    %v1476 = vadd.f32 %v1474, %v1475
    %v1477 = vrot.slane %v1476, 4
    %v1478 = vadd.f32 %v1476, %v1477
    %v1479 = vrot.slane %v1478, 2
    %v1480 = vadd.f32 %v1478, %v1479
    %v1481 = vrot.slane %v1480, 1
    %v1482 = vadd.f32 %v1480, %v1481
    %1484 = vset.pattern.permute.xlu0 8
    %1485 = vperm.xlu0 %1484, %v23
    %v1486 = vpop.permute.xlu0 %1485
    %v1488 = vadd.f32 %v1482, %v1486
    %1489 = vst [vmem:[#allocation2] sm:$0x1] %v1488
    // Predicated region
    $region14: #{tpu_custom_call.1} parent=1 // pred_check
      _
    $region15: #{tpu_custom_call.1} parent=1 // pred_check_branch
      %1491 = sbr.rel (0) target = $region17
    $region16: #{tpu_custom_call.1} parent=1 // pred_region
      %s1493 = ssub.s32 16, 16
      %1494 = vsyncadd [#allocation3], %s1493
      %s1496 = sshll.u32 [#allocation2], 4
      %s1497 = int_to_ptr.vmem [resolvable:$true] %s1496
      %1499 = dma.vmem_to_hbm [thread:$0]  %s1497, 16, %s3, [#allocation3]
    $region17: #{tpu_custom_call.1} parent=1 // pred_fallthru
      _
    // Predicated region
    $region18: #{tpu_custom_call.1} parent=1 // pred_check
      _
    $region19: #{tpu_custom_call.1} parent=1 // pred_check_branch
      %1501 = sbr.rel (0) target = $region21
    $region20: #{tpu_custom_call.1} parent=1 // pred_region
      %1502 = dma.done [#allocation3], 16
    $region21: #{tpu_custom_call.1} parent=1 // pred_fallthru
      _
    %1503 = vsyncpa [#allocation3], 1

</llo_original>
